<compile_context>
chip_gen: v6e
topology: v6e:2x2x1
jax: 0.10.0
libtpu: 0.0.40
codegen_flags: <defaults>
</compile_context>

<pallas_src>
import functools
import math

import jax
import jax.numpy as jnp
from jax.experimental import pallas as pl
from jax.experimental.pallas import tpu as pltpu


# ----------------------------------------------------------------------------
# Fused multi-layer LSTM kernel (grid = (layer, time_chunk))
# ----------------------------------------------------------------------------
def _make_fused_lstm_kernel(n_layers, T, CH, Bp, H):
    """Ref layout (n_layers > 1):
         inputs : emb (CH*Bp, E) bf16, wih0 (E,4H) bf16, b0 (1,4H) f32,
                  whh (1,H,4H) bf16, wih_rest (1,H,4H) bf16, b_rest (1,1,4H) f32
         outputs: h_out (1,Bp,H) f32, c_out (1,Bp,H) f32
         scratch: gx_sc (CH*Bp,4H) f32, seq_sc (T*Bp,H) f32, h_sc (Bp,H), c_sc (Bp,H)
       Gate order (i, f, g, o) contiguous along the 4H axis (PyTorch layout)."""
    G = 4 * H
    TC = T // CH
    rows = CH * Bp

    def kernel(*refs):
        if n_layers > 1:
            (emb_ref, wih0_ref, b0_ref, whh_ref, wih_r_ref, b_r_ref,
             h_out_ref, c_out_ref, gx_sc, seq_sc, h_sc, c_sc) = refs
        else:
            (emb_ref, wih0_ref, b0_ref, whh_ref,
             h_out_ref, c_out_ref, gx_sc, h_sc, c_sc) = refs
            wih_r_ref = b_r_ref = seq_sc = None

        l = pl.program_id(0)                     # layer        (outer, arbitrary)
        tc = pl.program_id(1)                    # time chunk   (inner, arbitrary)
        row0 = pl.multiple_of(tc * rows, rows)

        # Each layer starts from h0 = c0 = 0.
        @pl.when(tc == 0)
        def _():
            h_sc[...] = jnp.zeros_like(h_sc)
            c_sc[...] = jnp.zeros_like(c_sc)

        # ---- Input projection for this chunk: one bf16 MXU matmul, f32 accumulate.
        @pl.when(l == 0)
        def _():
            gx_sc[...] = (jnp.dot(emb_ref[...], wih0_ref[...],
                                  preferred_element_type=jnp.float32)
                          + b0_ref[...])

        if n_layers > 1:
            @pl.when(l > 0)
            def _():
                seq_chunk = seq_sc[pl.ds(row0, rows), :].astype(jnp.bfloat16)
                gx_sc[...] = (jnp.dot(seq_chunk, wih_r_ref[0],
                                      preferred_element_type=jnp.float32)
                              + b_r_ref[0])

        # Recurrent weight: (H, 4H) bf16 -- a couple of vregs, read once per chunk.
        whh = whh_ref[0]

        def step(t, carry):
            h, c = carry
            row = pl.multiple_of(t * Bp, Bp)
            gx_t = gx_sc[pl.ds(row, Bp), :]                       # (Bp, 4H) f32
            gates = gx_t + jnp.dot(h.astype(jnp.bfloat16), whh,
                                   preferred_element_type=jnp.float32)
            # sigmoid(x) == 0.5*tanh(0.5*x) + 0.5  (single EUP op per gate).
            i_g = 0.5 * jnp.tanh(0.5 * gates[:, 0 * H:1 * H]) + 0.5
            f_g = 0.5 * jnp.tanh(0.5 * gates[:, 1 * H:2 * H]) + 0.5
            g_g = jnp.tanh(gates[:, 2 * H:3 * H])
            o_g = 0.5 * jnp.tanh(0.5 * gates[:, 3 * H:4 * H]) + 0.5
            c_n = f_g * c + i_g * g_g
            h_n = o_g * jnp.tanh(c_n)
            if n_layers > 1:
                # Next layer's input sequence (harmless extra store on the last layer).
                r = pl.multiple_of(row0 + row, Bp)
                seq_sc[pl.ds(r, Bp), :] = h_n
            return (h_n, c_n)

        h_T, c_T = jax.lax.fori_loop(0, CH, step, (h_sc[...], c_sc[...]),
                                     unroll=min(CH, 8))
        h_sc[...] = h_T
        c_sc[...] = c_T

        # Final states written once per layer (output block is revisited across tc).
        @pl.when(tc == TC - 1)
        def _():
            h_out_ref[0] = h_T
            c_out_ref[0] = c_T

    return kernel


def fused_lstm(emb_flat, wih0, b0, whh, wih_rest, b_rest, *, T, Bp, CH):
    """emb_flat: (T*Bp, E) bf16 embedded sequence (time-major, batch padded to Bp).
       wih0: (E,4H) bf16, b0: (1,4H) f32, whh: (L,H,4H) bf16,
       wih_rest: (L-1,H,4H) bf16 or None, b_rest: (L-1,1,4H) f32 or None.
       Returns (h_out, c_out), each (L, Bp, H) f32."""
    L, H, G = whh.shape
    E = wih0.shape[0]
    TC = T // CH
    rows = CH * Bp

    in_specs = [
        # Embedded chunks: layer 0 streams through them (prefetch of chunk tc+1
        # overlaps chunk tc's recurrence); deeper layers pin block 0 (no re-DMA).
        pl.BlockSpec((rows, E), lambda l, t: (jnp.where(l == 0, t, 0), 0)),
        pl.BlockSpec((E, G), lambda l, t: (0, 0)),
        pl.BlockSpec((1, G), lambda l, t: (0, 0)),
        pl.BlockSpec((1, H, G), lambda l, t: (l, 0, 0)),
    ]
    args = [emb_flat, wih0, b0, whh]
    scratch = [pltpu.VMEM((rows, G), jnp.float32)]                 # gx_sc (one chunk)
    if L > 1:
        in_specs += [
            pl.BlockSpec((1, H, G), lambda l, t: (jnp.maximum(l - 1, 0), 0, 0)),
            pl.BlockSpec((1, 1, G), lambda l, t: (jnp.maximum(l - 1, 0), 0, 0)),
        ]
        args += [wih_rest, b_rest]
        scratch.append(pltpu.VMEM((T * Bp, H), jnp.float32))       # inter-layer acts
    scratch += [pltpu.VMEM((Bp, H), jnp.float32),                  # h carry
                pltpu.VMEM((Bp, H), jnp.float32)]                  # c carry

    out_specs = [pl.BlockSpec((1, Bp, H), lambda l, t: (l, 0, 0)),
                 pl.BlockSpec((1, Bp, H), lambda l, t: (l, 0, 0))]

    # Explicit VMEM budget (double-buffered blocks + scratch), clamped to 64 MiB.
    est = 2 * rows * E * 2 + 2 * E * G * 2 + 2 * G * 4 + 2 * H * G * 2
    est += 2 * 2 * Bp * H * 4 + rows * G * 4 + 2 * Bp * H * 4
    if L > 1:
        est += 2 * H * G * 2 + 2 * G * 4 + T * Bp * H * 4
    vmem_limit = int(min(max(2 * est + (2 << 20), 16 << 20), 64 << 20))

    grid_spec = pltpu.PrefetchScalarGridSpec(
        num_scalar_prefetch=0,
        grid=(L, TC),                      # layers outer, time chunks inner
        in_specs=in_specs,
        out_specs=out_specs,
        scratch_shapes=scratch,
    )
    return pl.pallas_call(
        _make_fused_lstm_kernel(L, T, CH, Bp, H),
        grid_spec=grid_spec,
        out_shape=(jax.ShapeDtypeStruct((L, Bp, H), jnp.float32),
                   jax.ShapeDtypeStruct((L, Bp, H), jnp.float32)),
        compiler_params=pltpu.CompilerParams(
            dimension_semantics=("arbitrary", "arbitrary"),
            vmem_limit_bytes=vmem_limit),
    )(*args)


# ----------------------------------------------------------------------------
# Parameters (PyTorch layout) and one-time kernel-layout preparation
# ----------------------------------------------------------------------------
def init_encoder_params(key, input_dim, emb_dim, hid_dim, n_layers):
    """PyTorch-shaped params. Embedding ~ N(0,1); LSTM ~ U(-1/sqrt(H), 1/sqrt(H))."""
    keys = jax.random.split(key, 1 + 4 * n_layers)
    params = {"embedding": jax.random.normal(keys[0], (input_dim, emb_dim),
                                             dtype=jnp.float32)}
    bound = 1.0 / math.sqrt(hid_dim)
    layers = []
    for l in range(n_layers):
        in_sz = emb_dim if l == 0 else hid_dim
        k0, k1, k2, k3 = keys[1 + 4 * l: 1 + 4 * (l + 1)]
        layers.append({
            "w_ih": jax.random.uniform(k0, (4 * hid_dim, in_sz),
                                       minval=-bound, maxval=bound, dtype=jnp.float32),
            "w_hh": jax.random.uniform(k1, (4 * hid_dim, hid_dim),
                                       minval=-bound, maxval=bound, dtype=jnp.float32),
            "b_ih": jax.random.uniform(k2, (4 * hid_dim,),
                                       minval=-bound, maxval=bound, dtype=jnp.float32),
            "b_hh": jax.random.uniform(k3, (4 * hid_dim,),
                                       minval=-bound, maxval=bound, dtype=jnp.float32),
        })
    params["lstm"] = layers
    return params


def prepare_encoder_params(params):
    """One-time conversion of PyTorch-layout params into kernel layout:
    transposed, bias-fused, matmul operands cast to bf16 (biases / embedding f32)."""
    layers = params["lstm"]
    wih0 = layers[0]["w_ih"].T.astype(jnp.bfloat16)                        # (E, 4H)
    b0 = (layers[0]["b_ih"] + layers[0]["b_hh"]).astype(jnp.float32)[None, :]
    whh = jnp.stack([lp["w_hh"].T for lp in layers]).astype(jnp.bfloat16)  # (L, H, 4H)
    if len(layers) > 1:
        wih_rest = jnp.stack([lp["w_ih"].T
                              for lp in layers[1:]]).astype(jnp.bfloat16)  # (L-1,H,4H)
        b_rest = jnp.stack([(lp["b_ih"] + lp["b_hh"])[None, :]
                            for lp in layers[1:]]).astype(jnp.float32)     # (L-1,1,4H)
    else:
        wih_rest = None
        b_rest = None
    return {"embedding": params["embedding"].astype(jnp.float32),
            "wih0": wih0, "b0": b0, "whh": whh,
            "wih_rest": wih_rest, "b_rest": b_rest}


# ----------------------------------------------------------------------------
# Encoder forward
# ----------------------------------------------------------------------------
@functools.partial(jax.jit, static_argnames=("hid_dim", "time_chunk"))
def encoder_forward(prepared, src, *, hid_dim, time_chunk=None):
    """src: (T, B) int32.  Returns (hidden, cell), each (n_layers, B, hid_dim)."""
    T, B = src.shape
    # Embedding lookup (gather) -- plain-JAX glue feeding the kernel.
    embedded = jnp.take(prepared["embedding"], src, axis=0)                # (T, B, E)
    # Dropout: eval-mode identity.
    # TODO(synk): training-mode dropout (embedding + inter-layer LSTM dropout)
    # not implemented; forward matches model.eval() semantics.
    E = embedded.shape[-1]

    # Pad batch to a multiple of 8 sublanes (exact: batch rows are independent).
    Bp = ((B + 7) // 8) * 8
    if Bp != B:
        embedded = jnp.pad(embedded, ((0, 0), (0, Bp - B), (0, 0)))
    emb_flat = embedded.reshape(T * Bp, E).astype(jnp.bfloat16)            # MXU operand

    # Time-chunk length: largest divisor of T not exceeding the target.
    target = max(1, (256 // Bp) if time_chunk is None else time_chunk)
    CH = max(d for d in range(1, T + 1) if T % d == 0 and d <= target)

    h_pad, c_pad = fused_lstm(emb_flat, prepared["wih0"], prepared["b0"],
                              prepared["whh"], prepared["wih_rest"],
                              prepared["b_rest"], T=T, Bp=Bp, CH=CH)
    return h_pad[:, :B, :hid_dim], c_pad[:, :B, :hid_dim]


# ----------------------------------------------------------------------------
# Pure-JAX reference (lax.scan LSTM) for correctness checks
# ----------------------------------------------------------------------------
def _reference_forward(params, src, matmul_dtype=jnp.float32):
    embedded = jnp.take(params["embedding"], src, axis=0)
    x = embedded
    hs, cs = [], []
    for lp in params["lstm"]:
        H = lp["w_hh"].shape[1]
        wih_t = lp["w_ih"].T.astype(matmul_dtype)
        whh_t = lp["w_hh"].T.astype(matmul_dtype)
        b = (lp["b_ih"] + lp["b_hh"]).astype(jnp.float32)

        def step(carry, x_t):
            h, c = carry
            g = (jnp.dot(x_t.astype(matmul_dtype), wih_t,
                         preferred_element_type=jnp.float32)
                 + jnp.dot(h.astype(matmul_dtype), whh_t,
                           preferred_element_type=jnp.float32) + b)
            i = jax.nn.sigmoid(g[:, :H])
            f = jax.nn.sigmoid(g[:, H:2 * H])
            gg = jnp.tanh(g[:, 2 * H:3 * H])
            o = jax.nn.sigmoid(g[:, 3 * H:])
            c_new = f * c + i * gg
            h_new = o * jnp.tanh(c_new)
            return (h_new, c_new), h_new

        B = x.shape[1]
        (h_T, c_T), out = jax.lax.scan(
            step, (jnp.zeros((B, H), jnp.float32), jnp.zeros((B, H), jnp.float32)), x)
        x = out
        hs.append(h_T)
        cs.append(c_T)
    return jnp.stack(hs, 0), jnp.stack(cs, 0)


if __name__ == "__main__":
    INPUT_DIM = 50     # vocab size
    EMB_DIM = 32
    HID_DIM = 32
    N_LAYERS = 2
    T, B = 8, 6        # seq_len, batch (B deliberately NOT a multiple of 8)

    key = jax.random.PRNGKey(0)
    pkey, skey = jax.random.split(key)
    params = init_encoder_params(pkey, INPUT_DIM, EMB_DIM, HID_DIM, N_LAYERS)
    prepared = prepare_encoder_params(params)
    src = jax.random.randint(skey, (T, B), 0, INPUT_DIM, dtype=jnp.int32)

    # time_chunk=4 -> 2 time chunks: exercises chunk streaming + h/c carry-over.
    hidden, cell = encoder_forward(prepared, src, hid_dim=HID_DIM, time_chunk=4)
    jax.block_until_ready((hidden, cell))

    assert hidden.shape == (N_LAYERS, B, HID_DIM)
    assert cell.shape == (N_LAYERS, B, HID_DIM)

    # Apples-to-apples reference (same bf16 matmul operands, f32 accumulation/state).
    h_ref16, c_ref16 = _reference_forward(params, src, matmul_dtype=jnp.bfloat16)
    assert jnp.allclose(hidden, h_ref16, atol=2e-3, rtol=2e-3), \
        float(jnp.max(jnp.abs(hidden - h_ref16)))
    assert jnp.allclose(cell, c_ref16, atol=2e-3, rtol=2e-3), \
        float(jnp.max(jnp.abs(cell - c_ref16)))

    # Loose sanity vs the pure-f32 reference (difference = bf16 operand quantization).
    h_ref32, c_ref32 = _reference_forward(params, src)
    assert jnp.allclose(hidden, h_ref32, atol=5e-2, rtol=5e-2), \
        float(jnp.max(jnp.abs(hidden - h_ref32)))
    assert jnp.allclose(cell, c_ref32, atol=5e-2, rtol=5e-2), \
        float(jnp.max(jnp.abs(cell - c_ref32)))

    print("KERNEL_OK")
</pallas_src>

<mosaic_0001>
module attributes {stable_mosaic.version = 11 : i64} {
  func.func @kernel(%arg0: i32, %arg1: i32, %arg2: memref<32x32xbf16, #tpu.memory_space<vmem>>, %arg3: memref<32x128xbf16, #tpu.memory_space<vmem>>, %arg4: memref<1x128xf32, #tpu.memory_space<vmem>>, %arg5: memref<1x32x128xbf16, #tpu.memory_space<vmem>>, %arg6: memref<1x32x128xbf16, #tpu.memory_space<vmem>>, %arg7: memref<1x1x128xf32, #tpu.memory_space<vmem>>, %arg8: memref<1x8x32xf32, #tpu.memory_space<vmem>>, %arg9: memref<1x8x32xf32, #tpu.memory_space<vmem>>, %arg10: memref<32x128xf32, #tpu.memory_space<vmem>>, %arg11: memref<64x32xf32, #tpu.memory_space<vmem>>, %arg12: memref<8x32xf32, #tpu.memory_space<vmem>>, %arg13: memref<8x32xf32, #tpu.memory_space<vmem>>) attributes {dimension_semantics = [#tpu.dimension_semantics<arbitrary>, #tpu.dimension_semantics<arbitrary>], iteration_bounds = array<i64: 2, 2>, scalar_prefetch = 0 : i64, scratch_operands = 4 : i64, tpu.core_type = #tpu.core_type<tc>, window_params = [{transform_indices = @transform_0, window_bounds = array<i64: 32, 32>}, {pipeline_mode = #tpu.pipeline_mode<synchronous>, transform_indices = @transform_1, window_bounds = array<i64: 32, 128>}, {pipeline_mode = #tpu.pipeline_mode<synchronous>, transform_indices = @transform_2, window_bounds = array<i64: 1, 128>}, {transform_indices = @transform_3, window_bounds = array<i64: 1, 32, 128>}, {transform_indices = @transform_4, window_bounds = array<i64: 1, 32, 128>}, {transform_indices = @transform_5, window_bounds = array<i64: 1, 1, 128>}, {transform_indices = @transform_6, window_bounds = array<i64: 1, 8, 32>}, {transform_indices = @transform_7, window_bounds = array<i64: 1, 8, 32>}]} {
    %c32_i32 = arith.constant 32 : i32
    %0 = arith.muli %arg1, %c32_i32 : i32
    %1 = tpu.assume_multiple %0, 32 : i32
    %c0_i32 = arith.constant 0 : i32
    %2 = arith.cmpi eq, %arg1, %c0_i32 : i32
    %3 = arith.extui %2 : i1 to i32
    %c0_i32_0 = arith.constant 0 : i32
    %4 = arith.cmpi ne, %3, %c0_i32_0 : i32
    scf.if %4 {
      %cst_68 = arith.constant 0.000000e+00 : f32
      %188 = vector.broadcast %cst_68 : f32 to vector<8x32xf32>
      %c0_69 = arith.constant 0 : index
      %c0_70 = arith.constant 0 : index
      %189 = vector.load %arg12[%c0_69, %c0_70] : memref<8x32xf32, #tpu.memory_space<vmem>>, vector<8x32xf32>
      tpu.vector_store %arg12[%c0_69, %c0_70], %188 {strides = array<i32>} : memref<8x32xf32, #tpu.memory_space<vmem>>, vector<8x32xf32>,
      %cst_71 = arith.constant 0.000000e+00 : f32
      %190 = vector.broadcast %cst_71 : f32 to vector<8x32xf32>
      %c0_72 = arith.constant 0 : index
      %c0_73 = arith.constant 0 : index
      %191 = vector.load %arg13[%c0_72, %c0_73] : memref<8x32xf32, #tpu.memory_space<vmem>>, vector<8x32xf32>
      tpu.vector_store %arg13[%c0_72, %c0_73], %190 {strides = array<i32>} : memref<8x32xf32, #tpu.memory_space<vmem>>, vector<8x32xf32>,
    } else {
    }
    %c0_i32_1 = arith.constant 0 : i32
    %5 = arith.cmpi eq, %arg0, %c0_i32_1 : i32
    %6 = arith.extui %5 : i1 to i32
    %c0_i32_2 = arith.constant 0 : i32
    %7 = arith.cmpi ne, %6, %c0_i32_2 : i32
    scf.if %7 {
      %c0_68 = arith.constant 0 : index
      %c0_69 = arith.constant 0 : index
      %188 = vector.load %arg2[%c0_68, %c0_69] : memref<32x32xbf16, #tpu.memory_space<vmem>>, vector<32x32xbf16>
      %c0_70 = arith.constant 0 : index
      %c0_71 = arith.constant 0 : index
      %189 = vector.load %arg3[%c0_70, %c0_71] : memref<32x128xbf16, #tpu.memory_space<vmem>>, vector<32x128xbf16>
      %cst_72 = arith.constant dense<0.000000e+00> : vector<32x128xf32>
      %190 = tpu.matmul %188, %189, %cst_72 {dimension_numbers = #tpu.dot_dimension_numbers<[1], [0], [0], [1], [0, 0, 1, 1], [], []>} : vector<32x32xbf16>, vector<32x128xbf16>, vector<32x128xf32> -> vector<32x128xf32>
      %c0_73 = arith.constant 0 : index
      %c0_74 = arith.constant 0 : index
      %191 = vector.load %arg4[%c0_73, %c0_74] : memref<1x128xf32, #tpu.memory_space<vmem>>, vector<1x128xf32>
      %192 = vector.broadcast %191 : vector<1x128xf32> to vector<32x128xf32>
      %193 = arith.addf %190, %192 : vector<32x128xf32>
      %c0_75 = arith.constant 0 : index
      %c0_76 = arith.constant 0 : index
      %194 = vector.load %arg10[%c0_75, %c0_76] : memref<32x128xf32, #tpu.memory_space<vmem>>, vector<32x128xf32>
      tpu.vector_store %arg10[%c0_75, %c0_76], %193 {strides = array<i32>} : memref<32x128xf32, #tpu.memory_space<vmem>>, vector<32x128xf32>,
    } else {
    }
    %c0_i32_3 = arith.constant 0 : i32
    %8 = arith.cmpi sgt, %arg0, %c0_i32_3 : i32
    %9 = arith.extui %8 : i1 to i32
    %c0_i32_4 = arith.constant 0 : i32
    %10 = arith.cmpi ne, %9, %c0_i32_4 : i32
    scf.if %10 {
      %188 = arith.index_cast %1 : i32 to index
      %c0_68 = arith.constant 0 : index
      %189 = vector.load %arg11[%188, %c0_68] : memref<64x32xf32, #tpu.memory_space<vmem>>, vector<32x32xf32>
      %190 = arith.truncf %189 : vector<32x32xf32> to vector<32x32xbf16>
      %c0_69 = arith.constant 0 : index
      %c0_70 = arith.constant 0 : index
      %c0_71 = arith.constant 0 : index
      %191 = vector.load %arg6[%c0_69, %c0_70, %c0_71] : memref<1x32x128xbf16, #tpu.memory_space<vmem>>, vector<1x32x128xbf16>
      %192 = vector.shape_cast %191 : vector<1x32x128xbf16> to vector<32x128xbf16>
      %cst_72 = arith.constant dense<0.000000e+00> : vector<32x128xf32>
      %193 = tpu.matmul %190, %192, %cst_72 {dimension_numbers = #tpu.dot_dimension_numbers<[1], [0], [0], [1], [0, 0, 1, 1], [], []>} : vector<32x32xbf16>, vector<32x128xbf16>, vector<32x128xf32> -> vector<32x128xf32>
      %c0_73 = arith.constant 0 : index
      %c0_74 = arith.constant 0 : index
      %c0_75 = arith.constant 0 : index
      %194 = vector.load %arg7[%c0_73, %c0_74, %c0_75] : memref<1x1x128xf32, #tpu.memory_space<vmem>>, vector<1x1x128xf32>
      %195 = vector.shape_cast %194 : vector<1x1x128xf32> to vector<1x128xf32>
      %196 = vector.broadcast %195 : vector<1x128xf32> to vector<32x128xf32>
      %197 = arith.addf %193, %196 : vector<32x128xf32>
      %c0_76 = arith.constant 0 : index
      %c0_77 = arith.constant 0 : index
      %198 = vector.load %arg10[%c0_76, %c0_77] : memref<32x128xf32, #tpu.memory_space<vmem>>, vector<32x128xf32>
      tpu.vector_store %arg10[%c0_76, %c0_77], %197 {strides = array<i32>} : memref<32x128xf32, #tpu.memory_space<vmem>>, vector<32x128xf32>,
    } else {
    }
    %c0 = arith.constant 0 : index
    %c0_5 = arith.constant 0 : index
    %c0_6 = arith.constant 0 : index
    %11 = vector.load %arg5[%c0, %c0_5, %c0_6] : memref<1x32x128xbf16, #tpu.memory_space<vmem>>, vector<1x32x128xbf16>
    %12 = vector.shape_cast %11 : vector<1x32x128xbf16> to vector<32x128xbf16>
    %c0_7 = arith.constant 0 : index
    %c0_8 = arith.constant 0 : index
    %13 = vector.load %arg12[%c0_7, %c0_8] : memref<8x32xf32, #tpu.memory_space<vmem>>, vector<8x32xf32>
    %c0_9 = arith.constant 0 : index
    %c0_10 = arith.constant 0 : index
    %14 = vector.load %arg13[%c0_9, %c0_10] : memref<8x32xf32, #tpu.memory_space<vmem>>, vector<8x32xf32>
    %c0_i32_11 = arith.constant 0 : i32
    %c8_i32 = arith.constant 8 : i32
    %15 = arith.muli %c0_i32_11, %c8_i32 : i32
    %16 = tpu.assume_multiple %15, 8 : i32
    %17 = arith.index_cast %16 : i32 to index
    %c0_12 = arith.constant 0 : index
    %18 = vector.load %arg10[%17, %c0_12] : memref<32x128xf32, #tpu.memory_space<vmem>>, vector<8x128xf32>
    %19 = arith.truncf %13 : vector<8x32xf32> to vector<8x32xbf16>
    %cst = arith.constant dense<0.000000e+00> : vector<8x128xf32>
    %20 = tpu.matmul %19, %12, %cst {dimension_numbers = #tpu.dot_dimension_numbers<[1], [0], [0], [1], [0, 0, 1, 1], [], []>} : vector<8x32xbf16>, vector<32x128xbf16>, vector<8x128xf32> -> vector<8x128xf32>
    %21 = arith.addf %18, %20 : vector<8x128xf32>
    %22 = vector.extract_strided_slice %21 {offsets = [0, 0], sizes = [8, 32], strides = [1, 1]} : vector<8x128xf32> to vector<8x32xf32>
    %cst_13 = arith.constant 5.000000e-01 : f32
    %23 = vector.broadcast %cst_13 : f32 to vector<8x32xf32>
    %24 = arith.mulf %23, %22 : vector<8x32xf32>
    %25 = math.tanh %24 : vector<8x32xf32>
    %cst_14 = arith.constant 5.000000e-01 : f32
    %26 = vector.broadcast %cst_14 : f32 to vector<8x32xf32>
    %27 = arith.mulf %26, %25 : vector<8x32xf32>
    %cst_15 = arith.constant 5.000000e-01 : f32
    %28 = vector.broadcast %cst_15 : f32 to vector<8x32xf32>
    %29 = arith.addf %27, %28 : vector<8x32xf32>
    %30 = vector.extract_strided_slice %21 {offsets = [0, 32], sizes = [8, 32], strides = [1, 1]} : vector<8x128xf32> to vector<8x32xf32>
    %cst_16 = arith.constant 5.000000e-01 : f32
    %31 = vector.broadcast %cst_16 : f32 to vector<8x32xf32>
    %32 = arith.mulf %31, %30 : vector<8x32xf32>
    %33 = math.tanh %32 : vector<8x32xf32>
    %cst_17 = arith.constant 5.000000e-01 : f32
    %34 = vector.broadcast %cst_17 : f32 to vector<8x32xf32>
    %35 = arith.mulf %34, %33 : vector<8x32xf32>
    %cst_18 = arith.constant 5.000000e-01 : f32
    %36 = vector.broadcast %cst_18 : f32 to vector<8x32xf32>
    %37 = arith.addf %35, %36 : vector<8x32xf32>
    %38 = vector.extract_strided_slice %21 {offsets = [0, 64], sizes = [8, 32], strides = [1, 1]} : vector<8x128xf32> to vector<8x32xf32>
    %39 = math.tanh %38 : vector<8x32xf32>
    %40 = vector.extract_strided_slice %21 {offsets = [0, 96], sizes = [8, 32], strides = [1, 1]} : vector<8x128xf32> to vector<8x32xf32>
    %cst_19 = arith.constant 5.000000e-01 : f32
    %41 = vector.broadcast %cst_19 : f32 to vector<8x32xf32>
    %42 = arith.mulf %41, %40 : vector<8x32xf32>
    %43 = math.tanh %42 : vector<8x32xf32>
    %cst_20 = arith.constant 5.000000e-01 : f32
    %44 = vector.broadcast %cst_20 : f32 to vector<8x32xf32>
    %45 = arith.mulf %44, %43 : vector<8x32xf32>
    %cst_21 = arith.constant 5.000000e-01 : f32
    %46 = vector.broadcast %cst_21 : f32 to vector<8x32xf32>
    %47 = arith.addf %45, %46 : vector<8x32xf32>
    %48 = arith.mulf %37, %14 : vector<8x32xf32>
    %49 = arith.mulf %29, %39 : vector<8x32xf32>
    %50 = arith.addf %48, %49 : vector<8x32xf32>
    %51 = math.tanh %50 : vector<8x32xf32>
    %52 = arith.mulf %47, %51 : vector<8x32xf32>
    %53 = arith.addi %1, %16 : i32
    %54 = tpu.assume_multiple %53, 8 : i32
    %55 = arith.index_cast %54 : i32 to index
    %c0_22 = arith.constant 0 : index
    %56 = vector.load %arg11[%55, %c0_22] : memref<64x32xf32, #tpu.memory_space<vmem>>, vector<8x32xf32>
    tpu.vector_store %arg11[%55, %c0_22], %52 {strides = array<i32>} : memref<64x32xf32, #tpu.memory_space<vmem>>, vector<8x32xf32>,
    %c1_i32 = arith.constant 1 : i32
    %c8_i32_23 = arith.constant 8 : i32
    %57 = arith.muli %c1_i32, %c8_i32_23 : i32
    %58 = tpu.assume_multiple %57, 8 : i32
    %59 = arith.index_cast %58 : i32 to index
    %c0_24 = arith.constant 0 : index
    %60 = vector.load %arg10[%59, %c0_24] : memref<32x128xf32, #tpu.memory_space<vmem>>, vector<8x128xf32>
    %61 = arith.truncf %52 : vector<8x32xf32> to vector<8x32xbf16>
    %cst_25 = arith.constant dense<0.000000e+00> : vector<8x128xf32>
    %62 = tpu.matmul %61, %12, %cst_25 {dimension_numbers = #tpu.dot_dimension_numbers<[1], [0], [0], [1], [0, 0, 1, 1], [], []>} : vector<8x32xbf16>, vector<32x128xbf16>, vector<8x128xf32> -> vector<8x128xf32>
    %63 = arith.addf %60, %62 : vector<8x128xf32>
    %64 = vector.extract_strided_slice %63 {offsets = [0, 0], sizes = [8, 32], strides = [1, 1]} : vector<8x128xf32> to vector<8x32xf32>
    %cst_26 = arith.constant 5.000000e-01 : f32
    %65 = vector.broadcast %cst_26 : f32 to vector<8x32xf32>
    %66 = arith.mulf %65, %64 : vector<8x32xf32>
    %67 = math.tanh %66 : vector<8x32xf32>
    %cst_27 = arith.constant 5.000000e-01 : f32
    %68 = vector.broadcast %cst_27 : f32 to vector<8x32xf32>
    %69 = arith.mulf %68, %67 : vector<8x32xf32>
    %cst_28 = arith.constant 5.000000e-01 : f32
    %70 = vector.broadcast %cst_28 : f32 to vector<8x32xf32>
    %71 = arith.addf %69, %70 : vector<8x32xf32>
    %72 = vector.extract_strided_slice %63 {offsets = [0, 32], sizes = [8, 32], strides = [1, 1]} : vector<8x128xf32> to vector<8x32xf32>
    %cst_29 = arith.constant 5.000000e-01 : f32
    %73 = vector.broadcast %cst_29 : f32 to vector<8x32xf32>
    %74 = arith.mulf %73, %72 : vector<8x32xf32>
    %75 = math.tanh %74 : vector<8x32xf32>
    %cst_30 = arith.constant 5.000000e-01 : f32
    %76 = vector.broadcast %cst_30 : f32 to vector<8x32xf32>
    %77 = arith.mulf %76, %75 : vector<8x32xf32>
    %cst_31 = arith.constant 5.000000e-01 : f32
    %78 = vector.broadcast %cst_31 : f32 to vector<8x32xf32>
    %79 = arith.addf %77, %78 : vector<8x32xf32>
    %80 = vector.extract_strided_slice %63 {offsets = [0, 64], sizes = [8, 32], strides = [1, 1]} : vector<8x128xf32> to vector<8x32xf32>
    %81 = math.tanh %80 : vector<8x32xf32>
    %82 = vector.extract_strided_slice %63 {offsets = [0, 96], sizes = [8, 32], strides = [1, 1]} : vector<8x128xf32> to vector<8x32xf32>
    %cst_32 = arith.constant 5.000000e-01 : f32
    %83 = vector.broadcast %cst_32 : f32 to vector<8x32xf32>
    %84 = arith.mulf %83, %82 : vector<8x32xf32>
    %85 = math.tanh %84 : vector<8x32xf32>
    %cst_33 = arith.constant 5.000000e-01 : f32
    %86 = vector.broadcast %cst_33 : f32 to vector<8x32xf32>
    %87 = arith.mulf %86, %85 : vector<8x32xf32>
    %cst_34 = arith.constant 5.000000e-01 : f32
    %88 = vector.broadcast %cst_34 : f32 to vector<8x32xf32>
    %89 = arith.addf %87, %88 : vector<8x32xf32>
    %90 = arith.mulf %79, %50 : vector<8x32xf32>
    %91 = arith.mulf %71, %81 : vector<8x32xf32>
    %92 = arith.addf %90, %91 : vector<8x32xf32>
    %93 = math.tanh %92 : vector<8x32xf32>
    %94 = arith.mulf %89, %93 : vector<8x32xf32>
    %95 = arith.addi %1, %58 : i32
    %96 = tpu.assume_multiple %95, 8 : i32
    %97 = arith.index_cast %96 : i32 to index
    %c0_35 = arith.constant 0 : index
    %98 = vector.load %arg11[%97, %c0_35] : memref<64x32xf32, #tpu.memory_space<vmem>>, vector<8x32xf32>
    tpu.vector_store %arg11[%97, %c0_35], %94 {strides = array<i32>} : memref<64x32xf32, #tpu.memory_space<vmem>>, vector<8x32xf32>,
    %c2_i32 = arith.constant 2 : i32
    %c8_i32_36 = arith.constant 8 : i32
    %99 = arith.muli %c2_i32, %c8_i32_36 : i32
    %100 = tpu.assume_multiple %99, 8 : i32
    %101 = arith.index_cast %100 : i32 to index
    %c0_37 = arith.constant 0 : index
    %102 = vector.load %arg10[%101, %c0_37] : memref<32x128xf32, #tpu.memory_space<vmem>>, vector<8x128xf32>
    %103 = arith.truncf %94 : vector<8x32xf32> to vector<8x32xbf16>
    %cst_38 = arith.constant dense<0.000000e+00> : vector<8x128xf32>
    %104 = tpu.matmul %103, %12, %cst_38 {dimension_numbers = #tpu.dot_dimension_numbers<[1], [0], [0], [1], [0, 0, 1, 1], [], []>} : vector<8x32xbf16>, vector<32x128xbf16>, vector<8x128xf32> -> vector<8x128xf32>
    %105 = arith.addf %102, %104 : vector<8x128xf32>
    %106 = vector.extract_strided_slice %105 {offsets = [0, 0], sizes = [8, 32], strides = [1, 1]} : vector<8x128xf32> to vector<8x32xf32>
    %cst_39 = arith.constant 5.000000e-01 : f32
    %107 = vector.broadcast %cst_39 : f32 to vector<8x32xf32>
    %108 = arith.mulf %107, %106 : vector<8x32xf32>
    %109 = math.tanh %108 : vector<8x32xf32>
    %cst_40 = arith.constant 5.000000e-01 : f32
    %110 = vector.broadcast %cst_40 : f32 to vector<8x32xf32>
    %111 = arith.mulf %110, %109 : vector<8x32xf32>
    %cst_41 = arith.constant 5.000000e-01 : f32
    %112 = vector.broadcast %cst_41 : f32 to vector<8x32xf32>
    %113 = arith.addf %111, %112 : vector<8x32xf32>
    %114 = vector.extract_strided_slice %105 {offsets = [0, 32], sizes = [8, 32], strides = [1, 1]} : vector<8x128xf32> to vector<8x32xf32>
    %cst_42 = arith.constant 5.000000e-01 : f32
    %115 = vector.broadcast %cst_42 : f32 to vector<8x32xf32>
    %116 = arith.mulf %115, %114 : vector<8x32xf32>
    %117 = math.tanh %116 : vector<8x32xf32>
    %cst_43 = arith.constant 5.000000e-01 : f32
    %118 = vector.broadcast %cst_43 : f32 to vector<8x32xf32>
    %119 = arith.mulf %118, %117 : vector<8x32xf32>
    %cst_44 = arith.constant 5.000000e-01 : f32
    %120 = vector.broadcast %cst_44 : f32 to vector<8x32xf32>
    %121 = arith.addf %119, %120 : vector<8x32xf32>
    %122 = vector.extract_strided_slice %105 {offsets = [0, 64], sizes = [8, 32], strides = [1, 1]} : vector<8x128xf32> to vector<8x32xf32>
    %123 = math.tanh %122 : vector<8x32xf32>
    %124 = vector.extract_strided_slice %105 {offsets = [0, 96], sizes = [8, 32], strides = [1, 1]} : vector<8x128xf32> to vector<8x32xf32>
    %cst_45 = arith.constant 5.000000e-01 : f32
    %125 = vector.broadcast %cst_45 : f32 to vector<8x32xf32>
    %126 = arith.mulf %125, %124 : vector<8x32xf32>
    %127 = math.tanh %126 : vector<8x32xf32>
    %cst_46 = arith.constant 5.000000e-01 : f32
    %128 = vector.broadcast %cst_46 : f32 to vector<8x32xf32>
    %129 = arith.mulf %128, %127 : vector<8x32xf32>
    %cst_47 = arith.constant 5.000000e-01 : f32
    %130 = vector.broadcast %cst_47 : f32 to vector<8x32xf32>
    %131 = arith.addf %129, %130 : vector<8x32xf32>
    %132 = arith.mulf %121, %92 : vector<8x32xf32>
    %133 = arith.mulf %113, %123 : vector<8x32xf32>
    %134 = arith.addf %132, %133 : vector<8x32xf32>
    %135 = math.tanh %134 : vector<8x32xf32>
    %136 = arith.mulf %131, %135 : vector<8x32xf32>
    %137 = arith.addi %1, %100 : i32
    %138 = tpu.assume_multiple %137, 8 : i32
    %139 = arith.index_cast %138 : i32 to index
    %c0_48 = arith.constant 0 : index
    %140 = vector.load %arg11[%139, %c0_48] : memref<64x32xf32, #tpu.memory_space<vmem>>, vector<8x32xf32>
    tpu.vector_store %arg11[%139, %c0_48], %136 {strides = array<i32>} : memref<64x32xf32, #tpu.memory_space<vmem>>, vector<8x32xf32>,
    %c3_i32 = arith.constant 3 : i32
    %c8_i32_49 = arith.constant 8 : i32
    %141 = arith.muli %c3_i32, %c8_i32_49 : i32
    %142 = tpu.assume_multiple %141, 8 : i32
    %143 = arith.index_cast %142 : i32 to index
    %c0_50 = arith.constant 0 : index
    %144 = vector.load %arg10[%143, %c0_50] : memref<32x128xf32, #tpu.memory_space<vmem>>, vector<8x128xf32>
    %145 = arith.truncf %136 : vector<8x32xf32> to vector<8x32xbf16>
    %cst_51 = arith.constant dense<0.000000e+00> : vector<8x128xf32>
    %146 = tpu.matmul %145, %12, %cst_51 {dimension_numbers = #tpu.dot_dimension_numbers<[1], [0], [0], [1], [0, 0, 1, 1], [], []>} : vector<8x32xbf16>, vector<32x128xbf16>, vector<8x128xf32> -> vector<8x128xf32>
    %147 = arith.addf %144, %146 : vector<8x128xf32>
    %148 = vector.extract_strided_slice %147 {offsets = [0, 0], sizes = [8, 32], strides = [1, 1]} : vector<8x128xf32> to vector<8x32xf32>
    %cst_52 = arith.constant 5.000000e-01 : f32
    %149 = vector.broadcast %cst_52 : f32 to vector<8x32xf32>
    %150 = arith.mulf %149, %148 : vector<8x32xf32>
    %151 = math.tanh %150 : vector<8x32xf32>
    %cst_53 = arith.constant 5.000000e-01 : f32
    %152 = vector.broadcast %cst_53 : f32 to vector<8x32xf32>
    %153 = arith.mulf %152, %151 : vector<8x32xf32>
    %cst_54 = arith.constant 5.000000e-01 : f32
    %154 = vector.broadcast %cst_54 : f32 to vector<8x32xf32>
    %155 = arith.addf %153, %154 : vector<8x32xf32>
    %156 = vector.extract_strided_slice %147 {offsets = [0, 32], sizes = [8, 32], strides = [1, 1]} : vector<8x128xf32> to vector<8x32xf32>
    %cst_55 = arith.constant 5.000000e-01 : f32
    %157 = vector.broadcast %cst_55 : f32 to vector<8x32xf32>
    %158 = arith.mulf %157, %156 : vector<8x32xf32>
    %159 = math.tanh %158 : vector<8x32xf32>
    %cst_56 = arith.constant 5.000000e-01 : f32
    %160 = vector.broadcast %cst_56 : f32 to vector<8x32xf32>
    %161 = arith.mulf %160, %159 : vector<8x32xf32>
    %cst_57 = arith.constant 5.000000e-01 : f32
    %162 = vector.broadcast %cst_57 : f32 to vector<8x32xf32>
    %163 = arith.addf %161, %162 : vector<8x32xf32>
    %164 = vector.extract_strided_slice %147 {offsets = [0, 64], sizes = [8, 32], strides = [1, 1]} : vector<8x128xf32> to vector<8x32xf32>
    %165 = math.tanh %164 : vector<8x32xf32>
    %166 = vector.extract_strided_slice %147 {offsets = [0, 96], sizes = [8, 32], strides = [1, 1]} : vector<8x128xf32> to vector<8x32xf32>
    %cst_58 = arith.constant 5.000000e-01 : f32
    %167 = vector.broadcast %cst_58 : f32 to vector<8x32xf32>
    %168 = arith.mulf %167, %166 : vector<8x32xf32>
    %169 = math.tanh %168 : vector<8x32xf32>
    %cst_59 = arith.constant 5.000000e-01 : f32
    %170 = vector.broadcast %cst_59 : f32 to vector<8x32xf32>
    %171 = arith.mulf %170, %169 : vector<8x32xf32>
    %cst_60 = arith.constant 5.000000e-01 : f32
    %172 = vector.broadcast %cst_60 : f32 to vector<8x32xf32>
    %173 = arith.addf %171, %172 : vector<8x32xf32>
    %174 = arith.mulf %163, %134 : vector<8x32xf32>
    %175 = arith.mulf %155, %165 : vector<8x32xf32>
    %176 = arith.addf %174, %175 : vector<8x32xf32>
    %177 = math.tanh %176 : vector<8x32xf32>
    %178 = arith.mulf %173, %177 : vector<8x32xf32>
    %179 = arith.addi %1, %142 : i32
    %180 = tpu.assume_multiple %179, 8 : i32
    %181 = arith.index_cast %180 : i32 to index
    %c0_61 = arith.constant 0 : index
    %182 = vector.load %arg11[%181, %c0_61] : memref<64x32xf32, #tpu.memory_space<vmem>>, vector<8x32xf32>
    tpu.vector_store %arg11[%181, %c0_61], %178 {strides = array<i32>} : memref<64x32xf32, #tpu.memory_space<vmem>>, vector<8x32xf32>,
    %c4_i32 = arith.constant 4 : i32
    %c0_62 = arith.constant 0 : index
    %c0_63 = arith.constant 0 : index
    %183 = vector.load %arg12[%c0_62, %c0_63] : memref<8x32xf32, #tpu.memory_space<vmem>>, vector<8x32xf32>
    tpu.vector_store %arg12[%c0_62, %c0_63], %178 {strides = array<i32>} : memref<8x32xf32, #tpu.memory_space<vmem>>, vector<8x32xf32>,
    %c0_64 = arith.constant 0 : index
    %c0_65 = arith.constant 0 : index
    %184 = vector.load %arg13[%c0_64, %c0_65] : memref<8x32xf32, #tpu.memory_space<vmem>>, vector<8x32xf32>
    tpu.vector_store %arg13[%c0_64, %c0_65], %176 {strides = array<i32>} : memref<8x32xf32, #tpu.memory_space<vmem>>, vector<8x32xf32>,
    %c1_i32_66 = arith.constant 1 : i32
    %185 = arith.cmpi eq, %arg1, %c1_i32_66 : i32
    %186 = arith.extui %185 : i1 to i32
    %c0_i32_67 = arith.constant 0 : i32
    %187 = arith.cmpi ne, %186, %c0_i32_67 : i32
    scf.if %187 {
      %c0_68 = arith.constant 0 : index
      %c0_69 = arith.constant 0 : index
      %c0_70 = arith.constant 0 : index
      %188 = vector.load %arg8[%c0_68, %c0_69, %c0_70] : memref<1x8x32xf32, #tpu.memory_space<vmem>>, vector<1x8x32xf32>
      %189 = vector.shape_cast %188 : vector<1x8x32xf32> to vector<8x32xf32>
      %190 = vector.shape_cast %178 : vector<8x32xf32> to vector<1x8x32xf32>
      tpu.vector_store %arg8[%c0_68, %c0_69, %c0_70], %190 {strides = array<i32>} : memref<1x8x32xf32, #tpu.memory_space<vmem>>, vector<1x8x32xf32>,
      %c0_71 = arith.constant 0 : index
      %c0_72 = arith.constant 0 : index
      %c0_73 = arith.constant 0 : index
      %191 = vector.load %arg9[%c0_71, %c0_72, %c0_73] : memref<1x8x32xf32, #tpu.memory_space<vmem>>, vector<1x8x32xf32>
      %192 = vector.shape_cast %191 : vector<1x8x32xf32> to vector<8x32xf32>
      %193 = vector.shape_cast %176 : vector<8x32xf32> to vector<1x8x32xf32>
      tpu.vector_store %arg9[%c0_71, %c0_72, %c0_73], %193 {strides = array<i32>} : memref<1x8x32xf32, #tpu.memory_space<vmem>>, vector<1x8x32xf32>,
    } else {
    }
    return
  }
  func.func @transform_0(%arg0: i32, %arg1: i32) -> (i32, i32) {
    %c0_i32 = arith.constant 0 : i32
    %0 = arith.cmpi eq, %arg0, %c0_i32 : i32
    %c0_i32_0 = arith.constant 0 : i32
    %1 = arith.select %0, %arg1, %c0_i32_0 : i32
    %c0_i32_1 = arith.constant 0 : i32
    %c0_i32_2 = arith.constant 0 : i32
    return %1, %c0_i32_1 : i32, i32
  }
  func.func @transform_1(%arg0: i32, %arg1: i32) -> (i32, i32) {
    %c0_i32 = arith.constant 0 : i32
    %c0_i32_0 = arith.constant 0 : i32
    %c0_i32_1 = arith.constant 0 : i32
    return %c0_i32, %c0_i32_0 : i32, i32
  }
  func.func @transform_2(%arg0: i32, %arg1: i32) -> (i32, i32) {
    %c0_i32 = arith.constant 0 : i32
    %c0_i32_0 = arith.constant 0 : i32
    %c0_i32_1 = arith.constant 0 : i32
    return %c0_i32, %c0_i32_0 : i32, i32
  }
  func.func @transform_3(%arg0: i32, %arg1: i32) -> (i32, i32, i32) {
    %c0_i32 = arith.constant 0 : i32
    %c0_i32_0 = arith.constant 0 : i32
    %c0_i32_1 = arith.constant 0 : i32
    return %arg0, %c0_i32, %c0_i32_0 : i32, i32, i32
  }
  func.func @transform_4(%arg0: i32, %arg1: i32) -> (i32, i32, i32) {
    %c1_i32 = arith.constant 1 : i32
    %0 = arith.subi %arg0, %c1_i32 : i32
    %c0_i32 = arith.constant 0 : i32
    %1 = arith.maxsi %0, %c0_i32 : i32
    %c0_i32_0 = arith.constant 0 : i32
    %c0_i32_1 = arith.constant 0 : i32
    %c0_i32_2 = arith.constant 0 : i32
    return %1, %c0_i32_0, %c0_i32_1 : i32, i32, i32
  }
  func.func @transform_5(%arg0: i32, %arg1: i32) -> (i32, i32, i32) {
    %c1_i32 = arith.constant 1 : i32
    %0 = arith.subi %arg0, %c1_i32 : i32
    %c0_i32 = arith.constant 0 : i32
    %1 = arith.maxsi %0, %c0_i32 : i32
    %c0_i32_0 = arith.constant 0 : i32
    %c0_i32_1 = arith.constant 0 : i32
    %c0_i32_2 = arith.constant 0 : i32
    return %1, %c0_i32_0, %c0_i32_1 : i32, i32, i32
  }
  func.func @transform_6(%arg0: i32, %arg1: i32) -> (i32, i32, i32) {
    %c0_i32 = arith.constant 0 : i32
    %c0_i32_0 = arith.constant 0 : i32
    %c0_i32_1 = arith.constant 0 : i32
    return %arg0, %c0_i32, %c0_i32_0 : i32, i32, i32
  }
  func.func @transform_7(%arg0: i32, %arg1: i32) -> (i32, i32, i32) {
    %c0_i32 = arith.constant 0 : i32
    %c0_i32_0 = arith.constant 0 : i32
    %c0_i32_1 = arith.constant 0 : i32
    return %arg0, %c0_i32, %c0_i32_0 : i32, i32, i32
  }
}

</mosaic_0001>

<llo_original>
// kernel: encoder_forward.1
$region0: #{encoder_forward.1}
  #allocation0 [shape = 'u32[]', space=smem, size = 0x4, offset = 0x4, fixed_abs, tag = 'smem constant byte address 0x4 - core index']
  #allocation1 [shape = 'u32[144,128]{1,0:T(1,128)}', space=vmem, size = 0x12000, scoped, tag = 'internal scratch']
  #allocation2 [shape = 'f32[32,128]{1,0:T(8,128)}', space=vmem, size = 0x4000, scoped, tag = 'scratch operand']
  #allocation3 [shape = 'f32[64,32]{1,0:T(8,128)}', space=vmem, size = 0x8000, scoped, tag = 'scratch operand']
  #allocation4 [shape = 'f32[8,32]{1,0:T(8,128)}', space=vmem, size = 0x1000, scoped, tag = 'scratch operand']
  #allocation5 [shape = 'f32[8,32]{1,0:T(8,128)}', space=vmem, size = 0x1000, scoped, tag = 'scratch operand']
  %s0 = inlined_call_operand.vmem [shape: bf16[64,32], index: 0, kind: input, shape index: {}]
  %s1 = inlined_call_operand.vmem [shape: bf16[32,128], index: 1, kind: input, shape index: {}]
  %s2 = inlined_call_operand.vmem [shape: f32[1,128], index: 2, kind: input, shape index: {}]
  %s3 = inlined_call_operand.vmem [shape: bf16[2,32,128], index: 3, kind: input, shape index: {}]
  %s4 = inlined_call_operand.vmem [shape: bf16[1,32,128], index: 4, kind: input, shape index: {}]
  %s5 = inlined_call_operand.vmem [shape: f32[1,1,128], index: 5, kind: input, shape index: {}]
  %s6 = inlined_call_operand.vmem [shape: f32[2,8,32], index: 6, kind: output, shape index: {0}]
  %s7 = inlined_call_operand.vmem [shape: f32[2,8,32], index: 7, kind: output, shape index: {1}]
  %8 = xla_tuple %s6, %s7
  %s9 = sld [smem:[#allocation0]]
  $region81: #{encoder_forward.1} parent=0
    _
  %s11 = ssub.s32 1, %s9
  %s12 = scalar_select 0, %s11, %s9
  loop: start=0, step=1, limit=6
  $region2: #{encoder_forward.1} parent=0 // loop_pre_header
    _
  $region3: #{encoder_forward.1} parent=0 // loop_header
    %s14 = sphi 0, %s18
    %p15 = scmp.ge.s32.totalorder %s14, 6
    %s21 = sphi 0, %s33
    %s22 = sphi 0, %s29
    %s23 = sphi 0, %s21
    %s24 = sphi 0, %s22
    %s25 = sphi 0, %s23
    %s26 = sphi 0, %s24
    %s40 = sphi 0, %s42
    %s43 = sphi 0, %s40
    %s44 = sphi 0, %s43
    %s60 = sphi 0, %s44
    %s64 = sphi 0, %s64
    %s66 = sphi 0, %s64
    %s67 = sphi 0, %s66
    %s81 = sphi 0, %s67
    %s85 = sphi 0, %s85
    %s87 = sphi 0, %s85
    %s88 = sphi 0, %s87
    %s102 = sphi 0, %s88
    %s108 = sphi 0, %s110
    %s111 = sphi 0, %s108
    %s112 = sphi 0, %s111
    %s128 = sphi 0, %s112
    %s140 = sphi 0, %s142
    %s143 = sphi 0, %s140
    %s144 = sphi 0, %s143
    %s160 = sphi 0, %s144
    %s172 = sphi 0, %s174
    %s175 = sphi 0, %s172
    %s176 = sphi 0, %s175
    %s192 = sphi 0, %s176
    %s198 = sphi 0, %s200
    %s201 = sphi 0, %s198
    %s202 = sphi 0, %s201
    %s218 = sphi 0, %s202
    %s224 = sphi 0, %s226
    %s227 = sphi 0, %s224
    %s228 = sphi 0, %s227
    %s244 = sphi 0, %s228
  $region4: #{encoder_forward.1} parent=0 // loop_header_branch
    %17 = sbr.rel (%p15) target = $region8
  $region5: #{encoder_forward.1} parent=0 // loop_body
    %s19 = ssub.s32 %s14, 1
    %s20 = ssub.s32 %s14, 2
    %s27 = sadd.s32 1, %s22
    %p28 = scmp.ge.s32.totalorder %s27, 2
    %s29 = scalar_select %p28, 0, %s27
    %s30 = sadd.s32 1, %s21
    %s31 = scalar_select %p28, %s30, %s21
    %p32 = scmp.ge.s32.totalorder %s31, 2
    %s33 = scalar_select %p32, 0, %s31
    %p34 = scmp.eq.s32.totalorder %s21, 0
    %s35 = scalar_select %p34, %s22, 0
    %p36 = scmp.eq.s32.totalorder %s33, 0
    %s37 = scalar_select %p36, %s29, 0
    %s38 = ssub.s32 %s35, %s37
    %p39 = scmp.eq.s32.totalorder %s38, 0
    %s41 = sadd.s32 %s40, 1
    %s42 = scalar_select %p39, %s40, %s41
    %p45 = pneg %p39
    %p46 = scmp.eq.s32.totalorder %s14, 3
    %p47 = por %p45, %p46
    %p48 = scmp.ne.s32.totalorder %s40, %s43
    %p49 = scmp.eq.s32.totalorder %s14, 0
    %p50 = por %p48, %p49
    %p51 = scmp.ne.s32.totalorder %s40, %s43
    %p52 = scmp.eq.s32.totalorder %s19, 3
    %p53 = por %p51, %p52
    %p54 = scmp.ne.s32.totalorder %s43, %s44
    %p55 = scmp.eq.s32.totalorder %s19, 0
    %p56 = por %p54, %p55
    %p57 = scmp.ne.s32.totalorder %s43, %s44
    %p58 = scmp.eq.s32.totalorder %s20, 3
    %p59 = por %p57, %p58
    %p61 = scmp.ne.s32.totalorder %s44, %s60
    %p62 = scmp.eq.s32.totalorder %s20, 0
    %p63 = por %p61, %p62
    %s65 = sadd.s32 %s64, 1
    %p68 = scmp.eq.s32.totalorder %s14, 3
    %p69 = scmp.ne.s32.totalorder %s64, %s66
    %p70 = scmp.eq.s32.totalorder %s14, 0
    %p71 = por %p69, %p70
    %p72 = scmp.ne.s32.totalorder %s64, %s66
    %p73 = scmp.eq.s32.totalorder %s19, 3
    %p74 = por %p72, %p73
    %p75 = scmp.ne.s32.totalorder %s66, %s67
    %p76 = scmp.eq.s32.totalorder %s19, 0
    %p77 = por %p75, %p76
    %p78 = scmp.ne.s32.totalorder %s66, %s67
    %p79 = scmp.eq.s32.totalorder %s20, 3
    %p80 = por %p78, %p79
    %p82 = scmp.ne.s32.totalorder %s67, %s81
    %p83 = scmp.eq.s32.totalorder %s20, 0
    %p84 = por %p82, %p83
    %s86 = sadd.s32 %s85, 1
    %p89 = scmp.eq.s32.totalorder %s14, 3
    %p90 = scmp.ne.s32.totalorder %s85, %s87
    %p91 = scmp.eq.s32.totalorder %s14, 0
    %p92 = por %p90, %p91
    %p93 = scmp.ne.s32.totalorder %s85, %s87
    %p94 = scmp.eq.s32.totalorder %s19, 3
    %p95 = por %p93, %p94
    %p96 = scmp.ne.s32.totalorder %s87, %s88
    %p97 = scmp.eq.s32.totalorder %s19, 0
    %p98 = por %p96, %p97
    %p99 = scmp.ne.s32.totalorder %s87, %s88
    %p100 = scmp.eq.s32.totalorder %s20, 3
    %p101 = por %p99, %p100
    %p103 = scmp.ne.s32.totalorder %s88, %s102
    %p104 = scmp.eq.s32.totalorder %s20, 0
    %p105 = por %p103, %p104
    %s106 = ssub.s32 %s21, %s33
    %p107 = scmp.eq.s32.totalorder %s106, 0
    %s109 = sadd.s32 %s108, 1
    %s110 = scalar_select %p107, %s108, %s109
    %p113 = pneg %p107
    %p114 = scmp.eq.s32.totalorder %s14, 3
    %p115 = por %p113, %p114
    %p116 = scmp.ne.s32.totalorder %s108, %s111
    %p117 = scmp.eq.s32.totalorder %s14, 0
    %p118 = por %p116, %p117
    %p119 = scmp.ne.s32.totalorder %s108, %s111
    %p120 = scmp.eq.s32.totalorder %s19, 3
    %p121 = por %p119, %p120
    %p122 = scmp.ne.s32.totalorder %s111, %s112
    %p123 = scmp.eq.s32.totalorder %s19, 0
    %p124 = por %p122, %p123
    %p125 = scmp.ne.s32.totalorder %s111, %s112
    %p126 = scmp.eq.s32.totalorder %s20, 3
    %p127 = por %p125, %p126
    %p129 = scmp.ne.s32.totalorder %s112, %s128
    %p130 = scmp.eq.s32.totalorder %s20, 0
    %p131 = por %p129, %p130
    %s132 = ssub.s32 %s21, 1
    %p133 = scmp.gt.s32.totalorder %s132, 0
    %s134 = scalar_select %p133, %s132, 0
    %s135 = ssub.s32 %s33, 1
    %p136 = scmp.gt.s32.totalorder %s135, 0
    %s137 = scalar_select %p136, %s135, 0
    %s138 = ssub.s32 %s134, %s137
    %p139 = scmp.eq.s32.totalorder %s138, 0
    %s141 = sadd.s32 %s140, 1
    %s142 = scalar_select %p139, %s140, %s141
    %p145 = pneg %p139
    %p146 = scmp.eq.s32.totalorder %s14, 3
    %p147 = por %p145, %p146
    %p148 = scmp.ne.s32.totalorder %s140, %s143
    %p149 = scmp.eq.s32.totalorder %s14, 0
    %p150 = por %p148, %p149
    %p151 = scmp.ne.s32.totalorder %s140, %s143
    %p152 = scmp.eq.s32.totalorder %s19, 3
    %p153 = por %p151, %p152
    %p154 = scmp.ne.s32.totalorder %s143, %s144
    %p155 = scmp.eq.s32.totalorder %s19, 0
    %p156 = por %p154, %p155
    %p157 = scmp.ne.s32.totalorder %s143, %s144
    %p158 = scmp.eq.s32.totalorder %s20, 3
    %p159 = por %p157, %p158
    %p161 = scmp.ne.s32.totalorder %s144, %s160
    %p162 = scmp.eq.s32.totalorder %s20, 0
    %p163 = por %p161, %p162
    %s164 = ssub.s32 %s21, 1
    %p165 = scmp.gt.s32.totalorder %s164, 0
    %s166 = scalar_select %p165, %s164, 0
    %s167 = ssub.s32 %s33, 1
    %p168 = scmp.gt.s32.totalorder %s167, 0
    %s169 = scalar_select %p168, %s167, 0
    %s170 = ssub.s32 %s166, %s169
    %p171 = scmp.eq.s32.totalorder %s170, 0
    %s173 = sadd.s32 %s172, 1
    %s174 = scalar_select %p171, %s172, %s173
    %p177 = pneg %p171
    %p178 = scmp.eq.s32.totalorder %s14, 3
    %p179 = por %p177, %p178
    %p180 = scmp.ne.s32.totalorder %s172, %s175
    %p181 = scmp.eq.s32.totalorder %s14, 0
    %p182 = por %p180, %p181
    %p183 = scmp.ne.s32.totalorder %s172, %s175
    %p184 = scmp.eq.s32.totalorder %s19, 3
    %p185 = por %p183, %p184
    %p186 = scmp.ne.s32.totalorder %s175, %s176
    %p187 = scmp.eq.s32.totalorder %s19, 0
    %p188 = por %p186, %p187
    %p189 = scmp.ne.s32.totalorder %s175, %s176
    %p190 = scmp.eq.s32.totalorder %s20, 3
    %p191 = por %p189, %p190
    %p193 = scmp.ne.s32.totalorder %s176, %s192
    %p194 = scmp.eq.s32.totalorder %s20, 0
    %p195 = por %p193, %p194
    %s196 = ssub.s32 %s21, %s33
    %p197 = scmp.eq.s32.totalorder %s196, 0
    %s199 = sadd.s32 %s198, 1
    %s200 = scalar_select %p197, %s198, %s199
    %p203 = pneg %p197
    %p204 = scmp.eq.s32.totalorder %s14, 3
    %p205 = por %p203, %p204
    %p206 = scmp.ne.s32.totalorder %s198, %s201
    %p207 = scmp.eq.s32.totalorder %s14, 0
    %p208 = por %p206, %p207
    %p209 = scmp.ne.s32.totalorder %s198, %s201
    %p210 = scmp.eq.s32.totalorder %s19, 3
    %p211 = por %p209, %p210
    %p212 = scmp.ne.s32.totalorder %s201, %s202
    %p213 = scmp.eq.s32.totalorder %s19, 0
    %p214 = por %p212, %p213
    %p215 = scmp.ne.s32.totalorder %s201, %s202
    %p216 = scmp.eq.s32.totalorder %s20, 3
    %p217 = por %p215, %p216
    %p219 = scmp.ne.s32.totalorder %s202, %s218
    %p220 = scmp.eq.s32.totalorder %s20, 0
    %p221 = por %p219, %p220
    %s222 = ssub.s32 %s21, %s33
    %p223 = scmp.eq.s32.totalorder %s222, 0
    %s225 = sadd.s32 %s224, 1
    %s226 = scalar_select %p223, %s224, %s225
    %p229 = pneg %p223
    %p230 = scmp.eq.s32.totalorder %s14, 3
    %p231 = por %p229, %p230
    %p232 = scmp.ne.s32.totalorder %s224, %s227
    %p233 = scmp.eq.s32.totalorder %s14, 0
    %p234 = por %p232, %p233
    %p235 = scmp.ne.s32.totalorder %s224, %s227
    %p236 = scmp.eq.s32.totalorder %s19, 3
    %p237 = por %p235, %p236
    %p238 = scmp.ne.s32.totalorder %s227, %s228
    %p239 = scmp.eq.s32.totalorder %s19, 0
    %p240 = por %p238, %p239
    %p241 = scmp.ne.s32.totalorder %s227, %s228
    %p242 = scmp.eq.s32.totalorder %s20, 3
    %p243 = por %p241, %p242
    %p245 = scmp.ne.s32.totalorder %s228, %s244
    %p246 = scmp.eq.s32.totalorder %s20, 0
    %p247 = por %p245, %p246
    %p248 = scmp.le.s32.totalorder 1, %s14
    %p249 = scmp.lt.s32.totalorder %s14, 5
    %p250 = pnand %p248, %p249
    %p251 = pneg %p250
    // Predicated region
    $region9: #{encoder_forward.1} parent=5 // pred_check
      _
    $region10: #{encoder_forward.1} parent=5 // pred_check_branch
      %253 = sbr.rel (%p250) target = $region12
    $region11: #{encoder_forward.1} parent=5 // pred_region
      %s254 = ssub.s32 %s14, 1
      // Predicated region
      $region13: #{encoder_forward.1} parent=11 // pred_check
        %p255 = pneg %p77
      $region14: #{encoder_forward.1} parent=11 // pred_check_branch
        %257 = sbr.rel (%p255) target = $region16
      $region15: #{encoder_forward.1} parent=11 // pred_region
        _
      $region16: #{encoder_forward.1} parent=11 // pred_fallthru
        _
      // Predicated region
      $region17: #{encoder_forward.1} parent=11 // pred_check
        %p258 = pneg %p98
      $region18: #{encoder_forward.1} parent=11 // pred_check_branch
        %260 = sbr.rel (%p258) target = $region20
      $region19: #{encoder_forward.1} parent=11 // pred_region
        _
      $region20: #{encoder_forward.1} parent=11 // pred_fallthru
        _
    $region12: #{encoder_forward.1} parent=5 // pred_fallthru
      _
    %p261 = scmp.lt.s32.totalorder %s14, 4
    // Predicated region
    $region21: #{encoder_forward.1} parent=5 // pred_check
      %p262 = pneg %p261
    $region22: #{encoder_forward.1} parent=5 // pred_check_branch
      %264 = sbr.rel (%p262) target = $region24
    $region23: #{encoder_forward.1} parent=5 // pred_region
      // Predicated region
      $region25: #{encoder_forward.1} parent=23 // pred_check
        %p265 = pneg %p50
      $region26: #{encoder_forward.1} parent=23 // pred_check_branch
        %267 = sbr.rel (%p265) target = $region28
      $region27: #{encoder_forward.1} parent=23 // pred_region
        %p268 = scmp.eq.s32.totalorder %s21, 0
        %s269 = scalar_select %p268, %s22, 0
        %s270 = smul.u32 4, %s269
        %p271 = scmp.lt.s32.totalorder %s270, 7
        %s272 = scalar_select %p271, %s270, 7
        %s273 = smul.addr %s272, 4
        %s274 = scalar_lea.vmem %s0, %s273
        %p275 = scmp.eq.s32.totalorder %s21, 0
        %s276 = scalar_select %p275, %s22, 0
        %s277 = smul.u32 4, %s276
      $region28: #{encoder_forward.1} parent=23 // pred_fallthru
        _
      // Predicated region
      $region29: #{encoder_forward.1} parent=23 // pred_check
        %p278 = pneg %p118
      $region30: #{encoder_forward.1} parent=23 // pred_check_branch
        %280 = sbr.rel (%p278) target = $region32
      $region31: #{encoder_forward.1} parent=23 // pred_region
        %p281 = scmp.lt.s32.totalorder %s21, 1
        %s282 = scalar_select %p281, %s21, 1
        %s283 = smul.addr %s282, 4
        %s284 = smul.addr %s283, 4
        %s285 = scalar_lea.vmem %s3, %s284
      $region32: #{encoder_forward.1} parent=23 // pred_fallthru
        _
      // Predicated region
      $region33: #{encoder_forward.1} parent=23 // pred_check
        %p286 = pneg %p150
      $region34: #{encoder_forward.1} parent=23 // pred_check_branch
        %288 = sbr.rel (%p286) target = $region36
      $region35: #{encoder_forward.1} parent=23 // pred_region
        %s289 = ssub.s32 %s21, 1
        %p290 = scmp.gt.s32.totalorder %s289, 0
        %s291 = scalar_select %p290, %s289, 0
        %p292 = scmp.lt.s32.totalorder %s291, 0
        %s293 = scalar_select %p292, %s291, 0
        %s294 = smul.addr %s293, 4
        %s295 = smul.addr %s294, 4
        %s296 = scalar_lea.vmem %s4, %s295
        %s297 = ssub.s32 %s21, 1
        %p298 = scmp.gt.s32.totalorder %s297, 0
        %s299 = scalar_select %p298, %s297, 0
      $region36: #{encoder_forward.1} parent=23 // pred_fallthru
        _
      // Predicated region
      $region37: #{encoder_forward.1} parent=23 // pred_check
        %p300 = pneg %p182
      $region38: #{encoder_forward.1} parent=23 // pred_check_branch
        %302 = sbr.rel (%p300) target = $region40
      $region39: #{encoder_forward.1} parent=23 // pred_region
        %s303 = ssub.s32 %s21, 1
        %p304 = scmp.gt.s32.totalorder %s303, 0
        %s305 = scalar_select %p304, %s303, 0
        %p306 = scmp.lt.s32.totalorder %s305, 0
        %s307 = scalar_select %p306, %s305, 0
        %s308 = scalar_lea.vmem %s5, %s307
        %s309 = ssub.s32 %s21, 1
        %p310 = scmp.gt.s32.totalorder %s309, 0
        %s311 = scalar_select %p310, %s309, 0
      $region40: #{encoder_forward.1} parent=23 // pred_fallthru
        _
    $region24: #{encoder_forward.1} parent=5 // pred_fallthru
      _
    %p312 = scmp.le.s32.totalorder 1, %s14
    %p313 = scmp.lt.s32.totalorder %s14, 5
    %p314 = pnand %p312, %p313
    %p315 = pneg %p314
    // Predicated region
    $region41: #{encoder_forward.1} parent=5 // pred_check
      _
    $region42: #{encoder_forward.1} parent=5 // pred_check_branch
      %317 = sbr.rel (%p314) target = $region44
    $region43: #{encoder_forward.1} parent=5 // pred_region
      %s318 = ssub.s32 %s14, 1
      %p319 = scmp.eq.s32.totalorder %s23, 0
      %s320 = scalar_select %p319, %s24, 0
      %s321 = smul.u32 4, %s320
      %p322 = scmp.lt.s32.totalorder %s321, 7
      %s323 = scalar_select %p322, %s321, 7
      %s324 = smul.addr %s323, 4
      %s325 = scalar_lea.vmem %s0, %s324
      %p326 = pneg %p56
      %p327 = pneg %p53
      %p328 = pneg %p77
      %p329 = pneg %p74
      %p330 = pneg %p98
      %p331 = pneg %p95
      %p332 = scmp.lt.s32.totalorder %s23, 1
      %s333 = scalar_select %p332, %s23, 1
      %s334 = smul.addr %s333, 4
      %s335 = smul.addr %s334, 4
      %s336 = scalar_lea.vmem %s3, %s335
      %p337 = pneg %p124
      %p338 = pneg %p121
      %s339 = ssub.s32 %s23, 1
      %p340 = scmp.gt.s32.totalorder %s339, 0
      %s341 = scalar_select %p340, %s339, 0
      %p342 = scmp.lt.s32.totalorder %s341, 0
      %s343 = scalar_select %p342, %s341, 0
      %s344 = smul.addr %s343, 4
      %s345 = smul.addr %s344, 4
      %s346 = scalar_lea.vmem %s4, %s345
      %p347 = pneg %p156
      %p348 = pneg %p153
      %s349 = ssub.s32 %s23, 1
      %p350 = scmp.gt.s32.totalorder %s349, 0
      %s351 = scalar_select %p350, %s349, 0
      %p352 = scmp.lt.s32.totalorder %s351, 0
      %s353 = scalar_select %p352, %s351, 0
      %s354 = scalar_lea.vmem %s5, %s353
      %p355 = pneg %p188
      %p356 = pneg %p185
      %p357 = pneg %p214
      %p358 = pneg %p211
      %p359 = scmp.lt.s32.totalorder %s23, 1
      %s360 = scalar_select %p359, %s23, 1
      %s361 = smul.addr %s360, 8
      %s362 = scalar_lea.vmem %s6, %s361
      %p363 = pneg %p240
      %p364 = pneg %p237
      %p365 = scmp.lt.s32.totalorder %s23, 1
      %s366 = scalar_select %p365, %s23, 1
      %s367 = smul.addr %s366, 8
      %s368 = scalar_lea.vmem %s7, %s367
      %p369 = scmp.eq.s32.totalorder %s23, 0
      %s370 = scalar_select %p369, %s24, 0
      %s371 = smul.u32 4, %s370
      %p372 = scmp.lt.s32.totalorder %s371, 7
      %s373 = scalar_select %p372, %s371, 7
      %s374 = smul.addr %s373, 4
      %s375 = scalar_lea.vmem %s0, %s374
      %p376 = scmp.eq.s32.totalorder %s23, 0
      %s377 = scalar_select %p376, %s24, 0
      %s378 = smul.u32 4, %s377
      %p379 = scmp.lt.s32.totalorder %s23, 1
      %s380 = scalar_select %p379, %s23, 1
      %s381 = smul.addr %s380, 4
      %s382 = smul.addr %s381, 4
      %s383 = scalar_lea.vmem %s3, %s382
      %s384 = ssub.s32 %s23, 1
      %p385 = scmp.gt.s32.totalorder %s384, 0
      %s386 = scalar_select %p385, %s384, 0
      %p387 = scmp.lt.s32.totalorder %s386, 0
      %s388 = scalar_select %p387, %s386, 0
      %s389 = smul.addr %s388, 4
      %s390 = smul.addr %s389, 4
      %s391 = scalar_lea.vmem %s4, %s390
      %s392 = ssub.s32 %s23, 1
      %p393 = scmp.gt.s32.totalorder %s392, 0
      %s394 = scalar_select %p393, %s392, 0
      %s395 = ssub.s32 %s23, 1
      %p396 = scmp.gt.s32.totalorder %s395, 0
      %s397 = scalar_select %p396, %s395, 0
      %p398 = scmp.lt.s32.totalorder %s397, 0
      %s399 = scalar_select %p398, %s397, 0
      %s400 = scalar_lea.vmem %s5, %s399
      %s401 = ssub.s32 %s23, 1
      %p402 = scmp.gt.s32.totalorder %s401, 0
      %s403 = scalar_select %p402, %s401, 0
      %p404 = scmp.lt.s32.totalorder %s23, 1
      %s405 = scalar_select %p404, %s23, 1
      %s406 = smul.addr %s405, 8
      %s407 = scalar_lea.vmem %s6, %s406
      %p408 = scmp.lt.s32.totalorder %s23, 1
      %s409 = scalar_select %p408, %s23, 1
      %s410 = smul.addr %s409, 8
      %s411 = scalar_lea.vmem %s7, %s410
      %s413 = smul.u32 %s24, 32
      %p414 = scmp.eq.s32.totalorder %s24, 0
      // Predicated region
      $region45: #{encoder_forward.1} parent=43 // pred_check
        %p415 = pneg %p414
      $region46: #{encoder_forward.1} parent=43 // pred_check_branch
        %417 = sbr.rel (%p415) target = $region48
      $region47: #{encoder_forward.1} parent=43 // pred_region
        %vm418 = vcmask 261120
        %419 = vst.msk [vmem:[#allocation4] sm:$0xff] %vm418, 0.0
        %420 = vst.msk [vmem:[#allocation5] sm:$0xff] %vm418, 0.0
      $region48: #{encoder_forward.1} parent=43 // pred_fallthru
        _
      %p421 = scmp.eq.s32.totalorder %s23, 0
      // Predicated region
      $region49: #{encoder_forward.1} parent=43 // pred_check
        %p422 = pneg %p421
      $region50: #{encoder_forward.1} parent=43 // pred_check_branch
        %424 = sbr.rel (%p422) target = $region52
      $region51: #{encoder_forward.1} parent=43 // pred_region
        %v425 = vld [vmem:[%s375] sm:$0xf]
        %v426 = vld [vmem:[%s375 + $0x4] sm:$0xf]
        %v427 = vld [vmem:[%s375 + $0x8] sm:$0xf]
        %v428 = vld [vmem:[%s375 + $0xc] sm:$0xf]
        %v429 = vld [vmem:[%s1] sm:$0xf]
        %v430 = vld [vmem:[%s1 + $0x4] sm:$0xf]
        %v431 = vld [vmem:[%s1 + $0x8] sm:$0xf]
        %v432 = vld [vmem:[%s1 + $0xc] sm:$0xf]
        %v433 = vld [vmem:[%s2] sm:$0x1]
        %v435 = vlaneseq
        %v436 = vshrl.u32 %v435, 7
        %v437 = vsub.s32 0, %v436
        %v438 = vrot.slane %v433, %v437
        %v444 = vunpack.c.l.b16 %v425
        %v445 = vunpack.c.l.b16 %v426
        %v446 = vunpack.c.l.b16 %v427
        %v447 = vunpack.c.l.b16 %v428
        %v448 = vpack.c.b16 %v445, %v444
        %v449 = vpack.c.b16 %v447, %v446
        %v454 = vunpack.c.l.b16 %v429
        %v455 = vunpack.c.l.b16 %v430
        %v456 = vunpack.c.l.b16 %v431
        %v457 = vunpack.c.l.b16 %v432
        %v458 = vpack.c.b16 %v455, %v454
        %v459 = vpack.c.b16 %v457, %v456
        %vm462 = vcmask 261120
        %v464 = vsel %vm462, %v448, 0
        %v467 = vsel %vm462, %v449, 0
        %469 = vmatprep.subr.bf16.mxu0 0
        %470 = vmatpush1.bf16.msra.mxu0 0
        %471 = vmatprep.subr.bf16.mxu0 0
        %472 = vmatpush1.bf16.msra.mxu0 0
        %473 = vmatprep.subr.bf16.mxu0 0
        %474 = vmatpush1.bf16.msra.mxu0 0
        %475 = vmatprep.subr.bf16.mxu0 0
        %476 = vmatpush1.bf16.msra.mxu0 0
        %477 = vmatprep.subr.bf16.mxu0 0
        %478 = vmatpush1.bf16.msra.mxu0 0
        %479 = vmatprep.subr.bf16.mxu0 0
        %480 = vmatpush1.bf16.msra.mxu0 0
        %481 = vmatprep.subr.bf16.mxu0 0
        %482 = vmatpush1.bf16.msra.mxu0 %v459
        %483 = vmatprep.subr.bf16.mxu0 0
        %484 = vmatpush1.bf16.msra.mxu0 %v458
        %485 = vmatprep.subr.bf16.mxu0 0
        %486 = vmatpush2.bf16.msra.mxu0 0
        %487 = vmatprep.subr.bf16.mxu0 0
        %488 = vmatpush2.bf16.msra.mxu0 0
        %489 = vmatprep.subr.bf16.mxu0 0
        %490 = vmatpush2.bf16.msra.mxu0 0
        %491 = vmatprep.subr.bf16.mxu0 0
        %492 = vmatpush2.bf16.msra.mxu0 0
        %493 = vmatprep.subr.bf16.mxu0 0
        %494 = vmatpush2.bf16.msra.mxu0 0
        %495 = vmatprep.subr.bf16.mxu0 0
        %496 = vmatpush2.bf16.msra.mxu0 0
        %497 = vmatprep.subr.bf16.mxu0 0
        %498 = vmatpush2.bf16.msra.mxu0 0
        %499 = vmatprep.subr.bf16.mxu0 0
        %500 = vmatpush2.bf16.msra.mxu0 0
        %501 = vmatprep.mubr.bf16.mxu0 0
        %502 = vmatmul.mubr.bf16.gmra.mxu0 %v464
        %v503 = vpop.f32.mrf.mxu0
        %v504 = vadd.f32 %v438, %v503
        %v505 = vpop.f32.mrf.mxu0
        %v506 = vpop.f32.mrf.mxu0
        %v507 = vadd.f32 %v438, %v506
        %v508 = vpop.f32.mrf.mxu0
        %509 = vmatprep.mubr.bf16.mxu0 0
        %510 = vmatmul.mubr.bf16.gmra.mxu0 %v467
        %v511 = vpop.f32.mrf.mxu0
        %v512 = vadd.f32 %v438, %v511
        %v513 = vpop.f32.mrf.mxu0
        %v514 = vpop.f32.mrf.mxu0
        %v515 = vadd.f32 %v438, %v514
        %v516 = vpop.f32.mrf.mxu0
        %517 = vdwg.mxu0
        %518 = vst [vmem:[#allocation2] sm:$0xff] %v504
        %519 = vst [vmem:[#allocation2 + $0x8] sm:$0xff] %v507
        %520 = vst [vmem:[#allocation2 + $0x10] sm:$0xff] %v512
        %521 = vst [vmem:[#allocation2 + $0x18] sm:$0xff] %v515
      $region52: #{encoder_forward.1} parent=43 // pred_fallthru
        _
      %p522 = scmp.gt.s32.totalorder %s23, 0
      // Predicated region
      $region53: #{encoder_forward.1} parent=43 // pred_check
        %p523 = pneg %p522
      $region54: #{encoder_forward.1} parent=43 // pred_check_branch
        %525 = sbr.rel (%p523) target = $region56
      $region55: #{encoder_forward.1} parent=43 // pred_region
        %s526 = scalar_lea.vmem [#allocation3], %s413
        %v527 = vld [vmem:[%s526] sm:$0xff]
        %v528 = vld [vmem:[%s526 + $0x8] sm:$0xff]
        %v529 = vld [vmem:[%s526 + $0x10] sm:$0xff]
        %v530 = vld [vmem:[%s526 + $0x18] sm:$0xff]
        %v531 = vpack.c.bf16 %v528, %v527
        %v532 = vpack.c.bf16 %v530, %v529
        %v533 = vld [vmem:[%s391] sm:$0xf]
        %v534 = vld [vmem:[%s391 + $0x4] sm:$0xf]
        %v535 = vld [vmem:[%s391 + $0x8] sm:$0xf]
        %v536 = vld [vmem:[%s391 + $0xc] sm:$0xf]
        %v537 = vld [vmem:[%s400] sm:$0x1]
        %v539 = vlaneseq
        %v540 = vshrl.u32 %v539, 7
        %v541 = vsub.s32 0, %v540
        %v542 = vrot.slane %v537, %v541
        %v548 = vunpack.c.l.b16 %v533
        %v549 = vunpack.c.l.b16 %v534
        %v550 = vunpack.c.l.b16 %v535
        %v551 = vunpack.c.l.b16 %v536
        %v552 = vpack.c.b16 %v549, %v548
        %v553 = vpack.c.b16 %v551, %v550
        %vm556 = vcmask 261120
        %v558 = vsel %vm556, %v531, 0
        %v561 = vsel %vm556, %v532, 0
        %563 = vmatprep.subr.bf16.mxu0 0
        %564 = vmatpush1.bf16.msra.mxu0 0
        %565 = vmatprep.subr.bf16.mxu0 0
        %566 = vmatpush1.bf16.msra.mxu0 0
        %567 = vmatprep.subr.bf16.mxu0 0
        %568 = vmatpush1.bf16.msra.mxu0 0
        %569 = vmatprep.subr.bf16.mxu0 0
        %570 = vmatpush1.bf16.msra.mxu0 0
        %571 = vmatprep.subr.bf16.mxu0 0
        %572 = vmatpush1.bf16.msra.mxu0 0
        %573 = vmatprep.subr.bf16.mxu0 0
        %574 = vmatpush1.bf16.msra.mxu0 0
        %575 = vmatprep.subr.bf16.mxu0 0
        %576 = vmatpush1.bf16.msra.mxu0 %v553
        %577 = vmatprep.subr.bf16.mxu0 0
        %578 = vmatpush1.bf16.msra.mxu0 %v552
        %579 = vmatprep.subr.bf16.mxu0 0
        %580 = vmatpush2.bf16.msra.mxu0 0
        %581 = vmatprep.subr.bf16.mxu0 0
        %582 = vmatpush2.bf16.msra.mxu0 0
        %583 = vmatprep.subr.bf16.mxu0 0
        %584 = vmatpush2.bf16.msra.mxu0 0
        %585 = vmatprep.subr.bf16.mxu0 0
        %586 = vmatpush2.bf16.msra.mxu0 0
        %587 = vmatprep.subr.bf16.mxu0 0
        %588 = vmatpush2.bf16.msra.mxu0 0
        %589 = vmatprep.subr.bf16.mxu0 0
        %590 = vmatpush2.bf16.msra.mxu0 0
        %591 = vmatprep.subr.bf16.mxu0 0
        %592 = vmatpush2.bf16.msra.mxu0 0
        %593 = vmatprep.subr.bf16.mxu0 0
        %594 = vmatpush2.bf16.msra.mxu0 0
        %595 = vmatprep.mubr.bf16.mxu0 0
        %596 = vmatmul.mubr.bf16.gmra.mxu0 %v558
        %v597 = vpop.f32.mrf.mxu0
        %v598 = vadd.f32 %v542, %v597
        %v599 = vpop.f32.mrf.mxu0
        %v600 = vpop.f32.mrf.mxu0
        %v601 = vadd.f32 %v542, %v600
        %v602 = vpop.f32.mrf.mxu0
        %603 = vmatprep.mubr.bf16.mxu0 0
        %604 = vmatmul.mubr.bf16.gmra.mxu0 %v561
        %v605 = vpop.f32.mrf.mxu0
        %v606 = vadd.f32 %v542, %v605
        %v607 = vpop.f32.mrf.mxu0
        %v608 = vpop.f32.mrf.mxu0
        %v609 = vadd.f32 %v542, %v608
        %v610 = vpop.f32.mrf.mxu0
        %611 = vdwg.mxu0
        %612 = vst [vmem:[#allocation2] sm:$0xff] %v598
        %613 = vst [vmem:[#allocation2 + $0x8] sm:$0xff] %v601
        %614 = vst [vmem:[#allocation2 + $0x10] sm:$0xff] %v606
        %615 = vst [vmem:[#allocation2 + $0x18] sm:$0xff] %v609
      $region56: #{encoder_forward.1} parent=43 // pred_fallthru
        _
      %v616 = vld [vmem:[%s383] sm:$0xf]
      %v617 = vld [vmem:[%s383 + $0x4] sm:$0xf]
      %v618 = vld [vmem:[%s383 + $0x8] sm:$0xf]
      %v619 = vld [vmem:[%s383 + $0xc] sm:$0xf]
      %v620 = vld [vmem:[#allocation4] sm:$0xff]
      %v621 = vld [vmem:[#allocation5] sm:$0xff]
      %v622 = vld [vmem:[#allocation2] sm:$0xff]
      %v623 = vpack.c.bf16 %v620, %v620
      %v628 = vunpack.c.l.b16 %v616
      %v629 = vunpack.c.l.b16 %v617
      %v630 = vunpack.c.l.b16 %v618
      %v631 = vunpack.c.l.b16 %v619
      %v632 = vpack.c.b16 %v629, %v628
      %v633 = vpack.c.b16 %v631, %v630
      %vm636 = vcmask 261120
      %v638 = vsel %vm636, %v623, 0
      %640 = vmatprep.subr.bf16.mxu0 0
      %641 = vmatpush1.bf16.msra.mxu0 0
      %642 = vmatprep.subr.bf16.mxu0 0
      %643 = vmatpush1.bf16.msra.mxu0 0
      %644 = vmatprep.subr.bf16.mxu0 0
      %645 = vmatpush1.bf16.msra.mxu0 0
      %646 = vmatprep.subr.bf16.mxu0 0
      %647 = vmatpush1.bf16.msra.mxu0 0
      %648 = vmatprep.subr.bf16.mxu0 0
      %649 = vmatpush1.bf16.msra.mxu0 0
      %650 = vmatprep.subr.bf16.mxu0 0
      %651 = vmatpush1.bf16.msra.mxu0 0
      %652 = vmatprep.subr.bf16.mxu0 0
      %653 = vmatpush1.bf16.msra.mxu0 %v633
      %654 = vmatprep.subr.bf16.mxu0 0
      %655 = vmatpush1.bf16.msra.mxu0 %v632
      %656 = vmatprep.subr.bf16.mxu0 0
      %657 = vmatpush2.bf16.msra.mxu0 0
      %658 = vmatprep.subr.bf16.mxu0 0
      %659 = vmatpush2.bf16.msra.mxu0 0
      %660 = vmatprep.subr.bf16.mxu0 0
      %661 = vmatpush2.bf16.msra.mxu0 0
      %662 = vmatprep.subr.bf16.mxu0 0
      %663 = vmatpush2.bf16.msra.mxu0 0
      %664 = vmatprep.subr.bf16.mxu0 0
      %665 = vmatpush2.bf16.msra.mxu0 0
      %666 = vmatprep.subr.bf16.mxu0 0
      %667 = vmatpush2.bf16.msra.mxu0 0
      %668 = vmatprep.subr.bf16.mxu0 0
      %669 = vmatpush2.bf16.msra.mxu0 0
      %670 = vmatprep.subr.bf16.mxu0 0
      %671 = vmatpush2.bf16.msra.mxu0 0
      %672 = vmatprep.mubr.bf16.mxu0 0
      %673 = vmatmul.mubr.bf16.gmra.mxu0 %v638
      %v674 = vpop.f32.mrf.mxu0
      %v675 = vadd.f32 0.0, %v674
      %v676 = vpop.f32.mrf.mxu0
      %v677 = vpop.f32.mrf.mxu0
      %v678 = vpop.f32.mrf.mxu0
      %679 = vdwg.mxu0
      %v680 = vadd.f32 %v622, %v675
      %v681 = vmul.f32 %v680, 0.5
      %v682 = vtanh.pop %v681
      %v683 = vmul.f32 %v682, 0.5
      %v684 = vadd.f32 %v683, 0.5
      %v685 = vtanh.pop %v680
      %687 = vrot.lane.b32.xlu0 %v621, 32
      %v688 = vpop.permute.xlu0 %687
      %v690 = vmul.f32 %v684, %v688
      %692 = vrot.lane.b32.xlu0 %v685, 64
      %v693 = vpop.permute.xlu0 %692
      %v695 = vmul.f32 %v684, %v693
      %697 = vrot.lane.b32.xlu0 %v695, 32
      %v698 = vpop.permute.xlu0 %697
      %v700 = vadd.f32 %v690, %v698
      %v701 = vtanh.pop %v700
      %703 = vrot.lane.b32.xlu0 %v701, 64
      %v704 = vpop.permute.xlu0 %703
      %v706 = vmul.f32 %v684, %v704
      %s707 = sadd.s32 %s413, 0
      %709 = vrot.lane.b32.xlu0 %v706, 32
      %v710 = vpop.permute.xlu0 %709
      %s712 = scalar_lea.vmem [#allocation3], %s707
      %713 = vst.msk [vmem:[%s712] sm:$0xff] %vm636, %v710
      %s714 = scalar_lea.vmem [#allocation2], 8
      %v715 = vld [vmem:[%s714] sm:$0xff]
      %v716 = vpack.c.bf16 %v706, %v706
      %718 = vrot.lane.b32.xlu0 %v716, 32
      %v719 = vpop.permute.xlu0 %718
      %v721 = vsel %vm636, %v719, 0
      %723 = vmatprep.subr.bf16.mxu0 0
      %724 = vmatpush1.bf16.msra.mxu0 0
      %725 = vmatprep.subr.bf16.mxu0 0
      %726 = vmatpush1.bf16.msra.mxu0 0
      %727 = vmatprep.subr.bf16.mxu0 0
      %728 = vmatpush1.bf16.msra.mxu0 0
      %729 = vmatprep.subr.bf16.mxu0 0
      %730 = vmatpush1.bf16.msra.mxu0 0
      %731 = vmatprep.subr.bf16.mxu0 0
      %732 = vmatpush1.bf16.msra.mxu0 0
      %733 = vmatprep.subr.bf16.mxu0 0
      %734 = vmatpush1.bf16.msra.mxu0 0
      %735 = vmatprep.subr.bf16.mxu0 0
      %736 = vmatpush1.bf16.msra.mxu0 %v633
      %737 = vmatprep.subr.bf16.mxu0 0
      %738 = vmatpush1.bf16.msra.mxu0 %v632
      %739 = vmatprep.subr.bf16.mxu0 0
      %740 = vmatpush2.bf16.msra.mxu0 0
      %741 = vmatprep.subr.bf16.mxu0 0
      %742 = vmatpush2.bf16.msra.mxu0 0
      %743 = vmatprep.subr.bf16.mxu0 0
      %744 = vmatpush2.bf16.msra.mxu0 0
      %745 = vmatprep.subr.bf16.mxu0 0
      %746 = vmatpush2.bf16.msra.mxu0 0
      %747 = vmatprep.subr.bf16.mxu0 0
      %748 = vmatpush2.bf16.msra.mxu0 0
      %749 = vmatprep.subr.bf16.mxu0 0
      %750 = vmatpush2.bf16.msra.mxu0 0
      %751 = vmatprep.subr.bf16.mxu0 0
      %752 = vmatpush2.bf16.msra.mxu0 0
      %753 = vmatprep.subr.bf16.mxu0 0
      %754 = vmatpush2.bf16.msra.mxu0 0
      %755 = vmatprep.mubr.bf16.mxu0 0
      %756 = vmatmul.mubr.bf16.gmra.mxu0 %v721
      %v757 = vpop.f32.mrf.mxu0
      %v758 = vadd.f32 0.0, %v757
      %v759 = vpop.f32.mrf.mxu0
      %v760 = vpop.f32.mrf.mxu0
      %v761 = vpop.f32.mrf.mxu0
      %762 = vdwg.mxu0
      %v763 = vadd.f32 %v715, %v758
      %v764 = vmul.f32 %v763, 0.5
      %v765 = vtanh.pop %v764
      %v766 = vmul.f32 %v765, 0.5
      %v767 = vadd.f32 %v766, 0.5
      %v768 = vtanh.pop %v763
      %v769 = vmul.f32 %v767, %v700
      %771 = vrot.lane.b32.xlu0 %v768, 64
      %v772 = vpop.permute.xlu0 %771
      %v774 = vmul.f32 %v767, %v772
      %776 = vrot.lane.b32.xlu0 %v774, 32
      %v777 = vpop.permute.xlu0 %776
      %v779 = vadd.f32 %v769, %v777
      %v780 = vtanh.pop %v779
      %782 = vrot.lane.b32.xlu0 %v780, 64
      %v783 = vpop.permute.xlu0 %782
      %v785 = vmul.f32 %v767, %v783
      %s786 = sadd.s32 %s413, 8
      %788 = vrot.lane.b32.xlu0 %v785, 32
      %v789 = vpop.permute.xlu0 %788
      %s791 = scalar_lea.vmem [#allocation3], %s786
      %792 = vst.msk [vmem:[%s791] sm:$0xff] %vm636, %v789
      %s793 = scalar_lea.vmem [#allocation2], 16
      %v794 = vld [vmem:[%s793] sm:$0xff]
      %v795 = vpack.c.bf16 %v785, %v785
      %797 = vrot.lane.b32.xlu0 %v795, 32
      %v798 = vpop.permute.xlu0 %797
      %v800 = vsel %vm636, %v798, 0
      %802 = vmatprep.subr.bf16.mxu0 0
      %803 = vmatpush1.bf16.msra.mxu0 0
      %804 = vmatprep.subr.bf16.mxu0 0
      %805 = vmatpush1.bf16.msra.mxu0 0
      %806 = vmatprep.subr.bf16.mxu0 0
      %807 = vmatpush1.bf16.msra.mxu0 0
      %808 = vmatprep.subr.bf16.mxu0 0
      %809 = vmatpush1.bf16.msra.mxu0 0
      %810 = vmatprep.subr.bf16.mxu0 0
      %811 = vmatpush1.bf16.msra.mxu0 0
      %812 = vmatprep.subr.bf16.mxu0 0
      %813 = vmatpush1.bf16.msra.mxu0 0
      %814 = vmatprep.subr.bf16.mxu0 0
      %815 = vmatpush1.bf16.msra.mxu0 %v633
      %816 = vmatprep.subr.bf16.mxu0 0
      %817 = vmatpush1.bf16.msra.mxu0 %v632
      %818 = vmatprep.subr.bf16.mxu0 0
      %819 = vmatpush2.bf16.msra.mxu0 0
      %820 = vmatprep.subr.bf16.mxu0 0
      %821 = vmatpush2.bf16.msra.mxu0 0
      %822 = vmatprep.subr.bf16.mxu0 0
      %823 = vmatpush2.bf16.msra.mxu0 0
      %824 = vmatprep.subr.bf16.mxu0 0
      %825 = vmatpush2.bf16.msra.mxu0 0
      %826 = vmatprep.subr.bf16.mxu0 0
      %827 = vmatpush2.bf16.msra.mxu0 0
      %828 = vmatprep.subr.bf16.mxu0 0
      %829 = vmatpush2.bf16.msra.mxu0 0
      %830 = vmatprep.subr.bf16.mxu0 0
      %831 = vmatpush2.bf16.msra.mxu0 0
      %832 = vmatprep.subr.bf16.mxu0 0
      %833 = vmatpush2.bf16.msra.mxu0 0
      %834 = vmatprep.mubr.bf16.mxu0 0
      %835 = vmatmul.mubr.bf16.gmra.mxu0 %v800
      %v836 = vpop.f32.mrf.mxu0
      %v837 = vadd.f32 0.0, %v836
      %v838 = vpop.f32.mrf.mxu0
      %v839 = vpop.f32.mrf.mxu0
      %v840 = vpop.f32.mrf.mxu0
      %841 = vdwg.mxu0
      %v842 = vadd.f32 %v794, %v837
      %v843 = vmul.f32 %v842, 0.5
      %v844 = vtanh.pop %v843
      %v845 = vmul.f32 %v844, 0.5
      %v846 = vadd.f32 %v845, 0.5
      %v847 = vtanh.pop %v842
      %v848 = vmul.f32 %v846, %v779
      %850 = vrot.lane.b32.xlu0 %v847, 64
      %v851 = vpop.permute.xlu0 %850
      %v853 = vmul.f32 %v846, %v851
      %855 = vrot.lane.b32.xlu0 %v853, 32
      %v856 = vpop.permute.xlu0 %855
      %v858 = vadd.f32 %v848, %v856
      %v859 = vtanh.pop %v858
      %861 = vrot.lane.b32.xlu0 %v859, 64
      %v862 = vpop.permute.xlu0 %861
      %v864 = vmul.f32 %v846, %v862
      %s865 = sadd.s32 %s413, 16
      %867 = vrot.lane.b32.xlu0 %v864, 32
      %v868 = vpop.permute.xlu0 %867
      %s870 = scalar_lea.vmem [#allocation3], %s865
      %871 = vst.msk [vmem:[%s870] sm:$0xff] %vm636, %v868
      %s872 = scalar_lea.vmem [#allocation2], 24
      %v873 = vld [vmem:[%s872] sm:$0xff]
      %v874 = vpack.c.bf16 %v864, %v864
      %876 = vrot.lane.b32.xlu0 %v874, 32
      %v877 = vpop.permute.xlu0 %876
      %v879 = vsel %vm636, %v877, 0
      %881 = vmatprep.subr.bf16.mxu0 0
      %882 = vmatpush1.bf16.msra.mxu0 0
      %883 = vmatprep.subr.bf16.mxu0 0
      %884 = vmatpush1.bf16.msra.mxu0 0
      %885 = vmatprep.subr.bf16.mxu0 0
      %886 = vmatpush1.bf16.msra.mxu0 0
      %887 = vmatprep.subr.bf16.mxu0 0
      %888 = vmatpush1.bf16.msra.mxu0 0
      %889 = vmatprep.subr.bf16.mxu0 0
      %890 = vmatpush1.bf16.msra.mxu0 0
      %891 = vmatprep.subr.bf16.mxu0 0
      %892 = vmatpush1.bf16.msra.mxu0 0
      %893 = vmatprep.subr.bf16.mxu0 0
      %894 = vmatpush1.bf16.msra.mxu0 %v633
      %895 = vmatprep.subr.bf16.mxu0 0
      %896 = vmatpush1.bf16.msra.mxu0 %v632
      %897 = vmatprep.subr.bf16.mxu0 0
      %898 = vmatpush2.bf16.msra.mxu0 0
      %899 = vmatprep.subr.bf16.mxu0 0
      %900 = vmatpush2.bf16.msra.mxu0 0
      %901 = vmatprep.subr.bf16.mxu0 0
      %902 = vmatpush2.bf16.msra.mxu0 0
      %903 = vmatprep.subr.bf16.mxu0 0
      %904 = vmatpush2.bf16.msra.mxu0 0
      %905 = vmatprep.subr.bf16.mxu0 0
      %906 = vmatpush2.bf16.msra.mxu0 0
      %907 = vmatprep.subr.bf16.mxu0 0
      %908 = vmatpush2.bf16.msra.mxu0 0
      %909 = vmatprep.subr.bf16.mxu0 0
      %910 = vmatpush2.bf16.msra.mxu0 0
      %911 = vmatprep.subr.bf16.mxu0 0
      %912 = vmatpush2.bf16.msra.mxu0 0
      %913 = vmatprep.mubr.bf16.mxu0 0
      %914 = vmatmul.mubr.bf16.gmra.mxu0 %v879
      %v915 = vpop.f32.mrf.mxu0
      %v916 = vadd.f32 0.0, %v915
      %v917 = vpop.f32.mrf.mxu0
      %v918 = vpop.f32.mrf.mxu0
      %v919 = vpop.f32.mrf.mxu0
      %920 = vdwg.mxu0
      %v921 = vadd.f32 %v873, %v916
      %v922 = vmul.f32 %v921, 0.5
      %v923 = vtanh.pop %v922
      %v924 = vmul.f32 %v923, 0.5
      %v925 = vadd.f32 %v924, 0.5
      %v926 = vtanh.pop %v921
      %v927 = vmul.f32 %v925, %v858
      %929 = vrot.lane.b32.xlu0 %v926, 64
      %v930 = vpop.permute.xlu0 %929
      %v932 = vmul.f32 %v925, %v930
      %934 = vrot.lane.b32.xlu0 %v932, 32
      %v935 = vpop.permute.xlu0 %934
      %v937 = vadd.f32 %v927, %v935
      %v938 = vtanh.pop %v937
      %940 = vrot.lane.b32.xlu0 %v938, 64
      %v941 = vpop.permute.xlu0 %940
      %v943 = vmul.f32 %v925, %v941
      %s944 = sadd.s32 %s413, 24
      %946 = vrot.lane.b32.xlu0 %v943, 32
      %v947 = vpop.permute.xlu0 %946
      %s949 = scalar_lea.vmem [#allocation3], %s944
      %950 = vst.msk [vmem:[%s949] sm:$0xff] %vm636, %v947
      %951 = vst.msk [vmem:[#allocation4] sm:$0xff] %vm636, %v947
      %953 = vrot.lane.b32.xlu0 %v937, 96
      %v954 = vpop.permute.xlu0 %953
      %956 = vst.msk [vmem:[#allocation5] sm:$0xff] %vm636, %v954
      %p957 = scmp.eq.s32.totalorder %s24, 1
      // Predicated region
      $region57: #{encoder_forward.1} parent=43 // pred_check
        %p958 = pneg %p957
      $region58: #{encoder_forward.1} parent=43 // pred_check_branch
        %960 = sbr.rel (%p958) target = $region60
      $region59: #{encoder_forward.1} parent=43 // pred_region
        %961 = vst.msk [vmem:[%s407] sm:$0xff] %vm636, %v947
        %962 = vst.msk [vmem:[%s411] sm:$0xff] %vm636, %v954
      $region60: #{encoder_forward.1} parent=43 // pred_fallthru
        _
      %p963 = scmp.lt.s32.totalorder %s23, 1
      %s964 = scalar_select %p963, %s23, 1
      %s965 = smul.addr %s964, 8
      %s966 = scalar_lea.vmem %s6, %s965
      %p967 = scmp.lt.s32.totalorder %s23, 1
      %s968 = scalar_select %p967, %s23, 1
      %s969 = smul.addr %s968, 8
      %s970 = scalar_lea.vmem %s7, %s969
      // Predicated region
      $region61: #{encoder_forward.1} parent=43 // pred_check
        %p971 = pneg %p211
      $region62: #{encoder_forward.1} parent=43 // pred_check_branch
        %973 = sbr.rel (%p971) target = $region64
      $region63: #{encoder_forward.1} parent=43 // pred_region
        _
      $region64: #{encoder_forward.1} parent=43 // pred_fallthru
        _
      // Predicated region
      $region65: #{encoder_forward.1} parent=43 // pred_check
        %p974 = pneg %p237
      $region66: #{encoder_forward.1} parent=43 // pred_check_branch
        %976 = sbr.rel (%p974) target = $region68
      $region67: #{encoder_forward.1} parent=43 // pred_region
        _
      $region68: #{encoder_forward.1} parent=43 // pred_fallthru
        _
    $region44: #{encoder_forward.1} parent=5 // pred_fallthru
      _
    %p977 = scmp.le.s32.totalorder 2, %s14
    // Predicated region
    $region69: #{encoder_forward.1} parent=5 // pred_check
      %p978 = pneg %p977
    $region70: #{encoder_forward.1} parent=5 // pred_check_branch
      %980 = sbr.rel (%p978) target = $region72
    $region71: #{encoder_forward.1} parent=5 // pred_region
      %s981 = ssub.s32 %s14, 2
      // Predicated region
      $region73: #{encoder_forward.1} parent=71 // pred_check
        %p982 = pneg %p217
      $region74: #{encoder_forward.1} parent=71 // pred_check_branch
        %984 = sbr.rel (%p982) target = $region76
      $region75: #{encoder_forward.1} parent=71 // pred_region
        %p985 = scmp.lt.s32.totalorder %s25, 1
        %s986 = scalar_select %p985, %s25, 1
        %s987 = smul.addr %s986, 8
        %s988 = scalar_lea.vmem %s6, %s987
      $region76: #{encoder_forward.1} parent=71 // pred_fallthru
        _
      // Predicated region
      $region77: #{encoder_forward.1} parent=71 // pred_check
        %p989 = pneg %p243
      $region78: #{encoder_forward.1} parent=71 // pred_check_branch
        %991 = sbr.rel (%p989) target = $region80
      $region79: #{encoder_forward.1} parent=71 // pred_region
        %p992 = scmp.lt.s32.totalorder %s25, 1
        %s993 = scalar_select %p992, %s25, 1
        %s994 = smul.addr %s993, 8
        %s995 = scalar_lea.vmem %s7, %s994
      $region80: #{encoder_forward.1} parent=71 // pred_fallthru
        _
    $region72: #{encoder_forward.1} parent=5 // pred_fallthru
      _
  $region6: #{encoder_forward.1} parent=0 // loop_footer
    %s18 = sadd.s32 1, %s14
  $region7: #{encoder_forward.1} parent=0 // loop_footer_branch
    %13 = sbr.rel target = $region3
  $region8: #{encoder_forward.1} parent=0 // loop_exit
    _

</llo_original>
